<compile_context>
chip_gen: v6e
topology: v6e:2x2x1
jax: 0.10.0
libtpu: 0.0.40
codegen_flags: <defaults>
</compile_context>

<pallas_src>
import math

import jax
import jax.numpy as jnp
from jax.experimental import pallas as pl
from jax.experimental.pallas import tpu as pltpu


# Scoped-VMEM budget: big enough for the weight-resident dense tiles at BERT-base
# shapes (~14-18 MiB of double-buffered blocks), with headroom under v7x's 64 MiB
# physical VMEM; v5e's 16 MiB scoped default is too small for these tiles.
_VMEM_LIMIT_BYTES = 40 * 1024 * 1024


# ----------------------------------------------------------------------------
# tiling helper: full dim if small, else the largest divisor of `dim` that is a
# multiple of `multiple` and <= target (falls back to the full dim).
# ----------------------------------------------------------------------------
def _tile(dim, target, multiple):
    if dim <= target:
        return dim
    t = (target // multiple) * multiple
    while t >= multiple:
        if dim % t == 0:
            return t
        t -= multiple
    return dim


# ----------------------------------------------------------------------------
# Dense: y = act(x @ w + b). bf16 in / bf16 out, f32 MXU accumulation.
# K is NOT tiled (single-shot reduction -> no scratch, no init/finalize).
# Grid is (N/tn, M/tm) with N as the OUTER axis so the weight panel's block
# index is constant across the inner M sweep and stays VMEM-resident.
# ----------------------------------------------------------------------------
def pallas_dense_bias_act(x, w, b, activation=None):
    M, K = x.shape
    N = w.shape[1]
    tm = _tile(M, 512, 128)    # 128/256-aligned row panels at BERT shapes
    tn = _tile(N, 768, 256)    # 2304 -> 768, 3072 -> 768 (MXU-friendly, weight near-resident)

    def kernel(x_ref, w_ref, b_ref, o_ref):
        y = jnp.dot(x_ref[...], w_ref[...], preferred_element_type=jnp.float32)
        y = y + b_ref[...]
        if activation == "gelu":
            # BERT default hidden_act="gelu" (exact, erf-based); f32 epilogue.
            y = 0.5 * y * (1.0 + jax.lax.erf(y * (1.0 / math.sqrt(2.0))))
        o_ref[...] = y.astype(o_ref.dtype)

    return pl.pallas_call(
        kernel,
        out_shape=jax.ShapeDtypeStruct((M, N), jnp.bfloat16),
        grid_spec=pltpu.PrefetchScalarGridSpec(
            num_scalar_prefetch=0,
            grid=(N // tn, M // tm),                      # j outer (weight resident), i inner
            in_specs=[
                pl.BlockSpec((tm, K), lambda j, i: (i, 0)),
                pl.BlockSpec((K, tn), lambda j, i: (0, j)),
                pl.BlockSpec((1, tn), lambda j, i: (0, j)),
            ],
            out_specs=pl.BlockSpec((tm, tn), lambda j, i: (i, j)),
        ),
        compiler_params=pltpu.CompilerParams(
            dimension_semantics=("parallel", "parallel"),
            vmem_limit_bytes=_VMEM_LIMIT_BYTES),
        cost_estimate=pl.CostEstimate(
            flops=2 * M * N * K,
            transcendentals=(M * N if activation == "gelu" else 0),
            bytes_accessed=2 * (M * K + K * N + M * N) + 4 * N),
    )(x, w, b)


# ----------------------------------------------------------------------------
# Dense with fused epilogue: LayerNorm(x @ w + b + residual).
# Full-K single-shot matmul (no k grid, no scratch); output N kept un-tiled so
# LN reduces over the whole hidden dim and the store stays lane-dense.
# The weight block index is constant -> fetched from HBM exactly once.
# ----------------------------------------------------------------------------
def pallas_dense_residual_ln(x, w, b, residual, gamma, beta, eps):
    M, K = x.shape
    N = w.shape[1]
    # Modest row panel: bounds the f32 LN-epilogue tile / vector-store pressure
    # (matters most on v5e's single vst slot) while keeping per-step MXU work
    # well above the ~0.35us grid-step overhead.
    tm = _tile(M, 256, 128)

    def kernel(x_ref, w_ref, b_ref, r_ref, g_ref, be_ref, o_ref):
        h = jnp.dot(x_ref[...], w_ref[...], preferred_element_type=jnp.float32)
        h = h + b_ref[...] + r_ref[...].astype(jnp.float32)
        mean = jnp.mean(h, axis=-1, keepdims=True)
        var = jnp.mean(jnp.square(h - mean), axis=-1, keepdims=True)
        y = (h - mean) * jax.lax.rsqrt(var + eps) * g_ref[...] + be_ref[...]
        o_ref[...] = y.astype(o_ref.dtype)

    return pl.pallas_call(
        kernel,
        out_shape=jax.ShapeDtypeStruct((M, N), jnp.bfloat16),
        grid_spec=pltpu.PrefetchScalarGridSpec(
            num_scalar_prefetch=0,
            grid=(M // tm,),
            in_specs=[
                pl.BlockSpec((tm, K), lambda i: (i, 0)),   # x row panel
                pl.BlockSpec((K, N), lambda i: (0, 0)),    # weight: constant block -> one DMA
                pl.BlockSpec((1, N), lambda i: (0, 0)),    # bias
                pl.BlockSpec((tm, N), lambda i: (i, 0)),   # residual
                pl.BlockSpec((1, N), lambda i: (0, 0)),    # gamma
                pl.BlockSpec((1, N), lambda i: (0, 0)),    # beta
            ],
            out_specs=pl.BlockSpec((tm, N), lambda i: (i, 0)),
        ),
        compiler_params=pltpu.CompilerParams(
            dimension_semantics=("parallel",),
            vmem_limit_bytes=_VMEM_LIMIT_BYTES),
        cost_estimate=pl.CostEstimate(
            flops=2 * M * N * K + 8 * M * N,
            transcendentals=M,
            bytes_accessed=2 * (M * K + K * N + 2 * M * N) + 12 * N),
    )(x, w, b, residual, gamma, beta)


# ----------------------------------------------------------------------------
# Standalone tiled LayerNorm (embedding LN). f32 in, bf16 out.
# ----------------------------------------------------------------------------
def pallas_layernorm(x, gamma, beta, eps):
    M, H = x.shape
    tm = _tile(M, 512, 8)

    def kernel(x_ref, g_ref, b_ref, o_ref):
        h = x_ref[...]
        mean = jnp.mean(h, axis=-1, keepdims=True)
        var = jnp.mean(jnp.square(h - mean), axis=-1, keepdims=True)
        o_ref[...] = ((h - mean) * jax.lax.rsqrt(var + eps) * g_ref[...]
                      + b_ref[...]).astype(o_ref.dtype)

    return pl.pallas_call(
        kernel,
        out_shape=jax.ShapeDtypeStruct((M, H), jnp.bfloat16),
        grid_spec=pltpu.PrefetchScalarGridSpec(
            num_scalar_prefetch=0,
            grid=(M // tm,),
            in_specs=[pl.BlockSpec((tm, H), lambda i: (i, 0)),
                      pl.BlockSpec((1, H), lambda i: (0, 0)),
                      pl.BlockSpec((1, H), lambda i: (0, 0))],
            out_specs=pl.BlockSpec((tm, H), lambda i: (i, 0)),
        ),
        compiler_params=pltpu.CompilerParams(
            dimension_semantics=("parallel",),
            vmem_limit_bytes=_VMEM_LIMIT_BYTES),
    )(x, gamma, beta)


# ----------------------------------------------------------------------------
# Multi-head self-attention reading q/k/v straight out of the fused (B*S, 3H)
# QKV activation and writing the context in merged-head (B*S, H) layout.
#   * single full-S KV pass -> one-shot softmax (no online rescale / scratch),
#   * several heads per grid step so column blocks are 128-lane dense,
#   * per-batch additive key-padding bias of shape (B, 1, S),
#   * 1/sqrt(Dh) already folded into the Q projection weights.
# ----------------------------------------------------------------------------
def pallas_attention(qkv, mask_bias, *, batch, seq, num_heads, head_dim):
    B, S, Dh = batch, seq, head_dim
    H = num_heads * Dh

    # heads per grid step: smallest head group whose column width is a multiple
    # of 128 lanes (dense DMA, unmasked stores). BERT-base: Dh=64 -> 2 heads.
    hpb = 0
    for c in range(1, num_heads + 1):
        if num_heads % c == 0 and (c * Dh) % 128 == 0:
            hpb = c
            break

    if hpb:
        # Read q/k/v directly out of the fused activation: same array passed
        # three times, column-block offsets select the Q / K / V regions.
        q_src = k_src = v_src = qkv
        cw = hpb * Dh
        GH = num_heads // hpb
        q_off, k_off, v_off = 0, GH, 2 * GH
    else:
        # Small-model fallback (H < 128): slice q/k/v so each column block can
        # span the full head dimension (keeps the (8,128) block rule happy).
        q_src = qkv[:, :H]
        k_src = qkv[:, H:2 * H]
        v_src = qkv[:, 2 * H:]
        hpb, cw, GH = num_heads, H, 1
        q_off = k_off = v_off = 0

    tq = _tile(S, 256, 8)
    nq = S // tq

    def kernel(q_ref, k_ref, v_ref, bias_ref, o_ref):
        bias = bias_ref[0]                            # (1, S) f32 additive key-padding bias
        for h in range(hpb):                          # static unroll over packed heads
            sl = slice(h * Dh, (h + 1) * Dh)
            qh = q_ref[:, sl]                         # (tq, Dh) bf16  (scale pre-folded)
            kh = k_ref[:, sl]                         # (S,  Dh) bf16
            vh = v_ref[:, sl]                         # (S,  Dh) bf16
            s = jax.lax.dot_general(qh, kh, (((1,), (1,)), ((), ())),
                                    preferred_element_type=jnp.float32)   # (tq, S)
            s = s + bias
            p = jnp.exp(s - jnp.max(s, axis=-1, keepdims=True))
            l = jnp.sum(p, axis=-1, keepdims=True)
            ctx = jnp.dot(p.astype(vh.dtype), vh,
                          preferred_element_type=jnp.float32)             # (tq, Dh)
            o_ref[:, sl] = (ctx * pl.reciprocal(l, approx=True)).astype(o_ref.dtype)

    return pl.pallas_call(
        kernel,
        out_shape=jax.ShapeDtypeStruct((B * S, H), jnp.bfloat16),
        grid_spec=pltpu.PrefetchScalarGridSpec(
            num_scalar_prefetch=0,
            grid=(B, GH, nq),
            in_specs=[
                pl.BlockSpec((tq, cw), lambda b, g, qi: (b * nq + qi, q_off + g)),
                pl.BlockSpec((S, cw), lambda b, g, qi: (b, k_off + g)),
                pl.BlockSpec((S, cw), lambda b, g, qi: (b, v_off + g)),
                pl.BlockSpec((1, 1, S), lambda b, g, qi: (b, 0, 0)),
            ],
            out_specs=pl.BlockSpec((tq, cw), lambda b, g, qi: (b * nq + qi, g)),
        ),
        compiler_params=pltpu.CompilerParams(
            dimension_semantics=("parallel", "parallel", "parallel"),
            vmem_limit_bytes=_VMEM_LIMIT_BYTES),
        cost_estimate=pl.CostEstimate(
            flops=4 * B * num_heads * S * S * Dh,
            transcendentals=B * num_heads * S * S,
            bytes_accessed=2 * 4 * B * S * H + 4 * B * S),
    )(q_src, k_src, v_src, mask_bias)


# ----------------------------------------------------------------------------
# Parameter construction (deterministic, synthetic — no checkpoint load).
# Weights bf16 (MXU inputs); biases / LN params / embedding tables f32.
# The 1/sqrt(Dh) attention score scale is folded into Wq (and would be folded
# into bq when loading a real checkpoint; it is zero here).
# ----------------------------------------------------------------------------
def init_params(key, cfg):
    H = cfg["hidden_size"]
    I = cfg["intermediate_size"]
    V = cfg["vocab_size"]
    P = cfg["max_position_embeddings"]
    T = cfg["type_vocab_size"]
    L = cfg["num_hidden_layers"]
    nH = cfg["num_attention_heads"]
    q_scale = 1.0 / math.sqrt(H // nH)

    def normal(k, shape, dtype=jnp.bfloat16, scale=0.02):
        return (scale * jax.random.normal(k, shape)).astype(dtype)

    keys = jax.random.split(key, 3 + L)
    params = {
        "word_emb": normal(keys[0], (V, H), jnp.float32),
        "pos_emb": normal(keys[1], (P, H), jnp.float32),
        "type_emb": normal(keys[2], (T, H), jnp.float32),
        "emb_ln_g": jnp.ones((1, H), jnp.float32),
        "emb_ln_b": jnp.zeros((1, H), jnp.float32),
        "layers": [],
    }
    for li in range(L):
        lk = jax.random.split(keys[3 + li], 4)
        wqkv = normal(lk[0], (H, 3 * H))
        wqkv = wqkv.at[:, :H].multiply(q_scale)        # fold softmax scale into Wq
        layer = {
            "wqkv": wqkv,                              # fused Q/K/V projection
            "bqkv": jnp.zeros((1, 3 * H), jnp.float32),
            "wo": normal(lk[1], (H, H)), "bo": jnp.zeros((1, H), jnp.float32),
            "ln1_g": jnp.ones((1, H), jnp.float32),
            "ln1_b": jnp.zeros((1, H), jnp.float32),
            "wi": normal(lk[2], (H, I)), "bi": jnp.zeros((1, I), jnp.float32),
            "wo2": normal(lk[3], (I, H)), "bo2": jnp.zeros((1, H), jnp.float32),
            "ln2_g": jnp.ones((1, H), jnp.float32),
            "ln2_b": jnp.zeros((1, H), jnp.float32),
        }
        params["layers"].append(layer)
    return params


# ----------------------------------------------------------------------------
# TextEncoder forward: returns last_hidden_state of shape (B, S, H)
# ----------------------------------------------------------------------------
def text_encoder_forward(params, input_ids, attention_mask, cfg):
    B, S = input_ids.shape
    H = cfg["hidden_size"]
    nH = cfg["num_attention_heads"]
    Dh = H // nH
    eps = cfg["layer_norm_eps"]

    # ---- embeddings (gathers / broadcast adds are plain-JAX glue) ----
    word = jnp.take(params["word_emb"], input_ids, axis=0)            # (B,S,H)
    pos = params["pos_emb"][:S][None]                                 # (1,S,H)
    typ = params["type_emb"][0][None, None]                           # token_type_ids == 0
    emb = (word + pos + typ).reshape(B * S, H).astype(jnp.float32)
    h = pallas_layernorm(emb, params["emb_ln_g"], params["emb_ln_b"], eps)   # bf16

    # per-batch additive key-padding bias, (B, 1, S): 0 for keep, -1e9 for pad.
    mask_bias = ((attention_mask.astype(jnp.float32) - 1.0) * 1e9)[:, None, :]

    for layer in params["layers"]:
        x = h                                                          # (B*S,H) bf16
        qkv = pallas_dense_bias_act(x, layer["wqkv"], layer["bqkv"])   # (B*S,3H)
        ctx = pallas_attention(qkv, mask_bias, batch=B, seq=S,
                               num_heads=nH, head_dim=Dh)              # (B*S,H) merged heads
        h = pallas_dense_residual_ln(ctx, layer["wo"], layer["bo"],
                                     x, layer["ln1_g"], layer["ln1_b"], eps)

        inter = pallas_dense_bias_act(h, layer["wi"], layer["bi"], activation="gelu")
        h = pallas_dense_residual_ln(inter, layer["wo2"], layer["bo2"],
                                     h, layer["ln2_g"], layer["ln2_b"], eps)

    # TODO(synk): dropout layers are identity in eval mode and token_type_ids are
    # assumed all-zero, matching the reference module's inference behaviour.
    return h.reshape(B, S, H).astype(jnp.float32)   # last_hidden_state


# ----------------------------------------------------------------------------
if __name__ == "__main__":
    cfg = dict(
        vocab_size=100,
        hidden_size=32,
        num_hidden_layers=2,
        num_attention_heads=4,
        intermediate_size=64,
        max_position_embeddings=16,
        type_vocab_size=2,
        layer_norm_eps=1e-12,
    )

    key = jax.random.PRNGKey(0)
    pkey, ikey = jax.random.split(key)
    params = init_params(pkey, cfg)

    B, S = 2, 8
    input_ids = jax.random.randint(ikey, (B, S), 0, cfg["vocab_size"], dtype=jnp.int32)
    attention_mask = jnp.array(
        [[1, 1, 1, 1, 1, 1, 0, 0],
         [1, 1, 1, 1, 1, 1, 1, 1]], dtype=jnp.int32
    )

    fwd = jax.jit(lambda p, ids, m: text_encoder_forward(p, ids, m, cfg))
    out = fwd(params, input_ids, attention_mask)
    out = jax.block_until_ready(out)
    assert out.shape == (B, S, cfg["hidden_size"])
    assert bool(jnp.all(jnp.isfinite(out)))
    print("KERNEL_OK")
</pallas_src>

<mosaic_0001>
module attributes {stable_mosaic.version = 11 : i64} {
  func.func @kernel(%arg0: i32, %arg1: memref<16x32xf32, #tpu.memory_space<vmem>>, %arg2: memref<1x32xf32, #tpu.memory_space<vmem>>, %arg3: memref<1x32xf32, #tpu.memory_space<vmem>>, %arg4: memref<16x32xbf16, #tpu.memory_space<vmem>>) attributes {dimension_semantics = [#tpu.dimension_semantics<parallel>], iteration_bounds = array<i64: 1>, scalar_prefetch = 0 : i64, scratch_operands = 0 : i64, tpu.core_type = #tpu.core_type<tc>, window_params = [{transform_indices = @transform_0, window_bounds = array<i64: 16, 32>}, {pipeline_mode = #tpu.pipeline_mode<synchronous>, transform_indices = @transform_1, window_bounds = array<i64: 1, 32>}, {pipeline_mode = #tpu.pipeline_mode<synchronous>, transform_indices = @transform_2, window_bounds = array<i64: 1, 32>}, {transform_indices = @transform_3, window_bounds = array<i64: 16, 32>}]} {
    %c0 = arith.constant 0 : index
    %c0_0 = arith.constant 0 : index
    %0 = vector.load %arg1[%c0, %c0_0] : memref<16x32xf32, #tpu.memory_space<vmem>>, vector<16x32xf32>
    %cst = arith.constant dense<0.000000e+00> : vector<16xf32>
    %1 = vector.multi_reduction <add>, %0, %cst [1] : vector<16x32xf32> to vector<16xf32>
    %2 = vector.shape_cast %1 : vector<16xf32> to vector<16x1xf32>
    %cst_1 = arith.constant 3.200000e+01 : f32
    %3 = vector.broadcast %cst_1 : f32 to vector<16x1xf32>
    %4 = arith.divf %2, %3 : vector<16x1xf32>
    %5 = vector.broadcast %4 : vector<16x1xf32> to vector<16x32xf32>
    %6 = arith.subf %0, %5 : vector<16x32xf32>
    %7 = arith.mulf %6, %6 : vector<16x32xf32>
    %cst_2 = arith.constant dense<0.000000e+00> : vector<16xf32>
    %8 = vector.multi_reduction <add>, %7, %cst_2 [1] : vector<16x32xf32> to vector<16xf32>
    %9 = vector.shape_cast %8 : vector<16xf32> to vector<16x1xf32>
    %cst_3 = arith.constant 3.200000e+01 : f32
    %10 = vector.broadcast %cst_3 : f32 to vector<16x1xf32>
    %11 = arith.divf %9, %10 : vector<16x1xf32>
    %12 = vector.broadcast %4 : vector<16x1xf32> to vector<16x32xf32>
    %13 = arith.subf %0, %12 : vector<16x32xf32>
    %cst_4 = arith.constant 9.99999996E-13 : f32
    %14 = vector.broadcast %cst_4 : f32 to vector<16x1xf32>
    %15 = arith.addf %11, %14 : vector<16x1xf32>
    %16 = math.rsqrt %15 : vector<16x1xf32>
    %17 = vector.broadcast %16 : vector<16x1xf32> to vector<16x32xf32>
    %18 = arith.mulf %13, %17 : vector<16x32xf32>
    %c0_5 = arith.constant 0 : index
    %c0_6 = arith.constant 0 : index
    %19 = vector.load %arg2[%c0_5, %c0_6] : memref<1x32xf32, #tpu.memory_space<vmem>>, vector<1x32xf32>
    %20 = vector.broadcast %19 : vector<1x32xf32> to vector<16x32xf32>
    %21 = arith.mulf %18, %20 : vector<16x32xf32>
    %c0_7 = arith.constant 0 : index
    %c0_8 = arith.constant 0 : index
    %22 = vector.load %arg3[%c0_7, %c0_8] : memref<1x32xf32, #tpu.memory_space<vmem>>, vector<1x32xf32>
    %23 = vector.broadcast %22 : vector<1x32xf32> to vector<16x32xf32>
    %24 = arith.addf %21, %23 : vector<16x32xf32>
    %25 = arith.truncf %24 : vector<16x32xf32> to vector<16x32xbf16>
    %c0_9 = arith.constant 0 : index
    %c0_10 = arith.constant 0 : index
    %26 = vector.load %arg4[%c0_9, %c0_10] : memref<16x32xbf16, #tpu.memory_space<vmem>>, vector<16x32xbf16>
    tpu.vector_store %arg4[%c0_9, %c0_10], %25 {strides = array<i32>} : memref<16x32xbf16, #tpu.memory_space<vmem>>, vector<16x32xbf16>,
    return
  }
  func.func @transform_0(%arg0: i32) -> (i32, i32) {
    %c0_i32 = arith.constant 0 : i32
    %c0_i32_0 = arith.constant 0 : i32
    return %arg0, %c0_i32 : i32, i32
  }
  func.func @transform_1(%arg0: i32) -> (i32, i32) {
    %c0_i32 = arith.constant 0 : i32
    %c0_i32_0 = arith.constant 0 : i32
    %c0_i32_1 = arith.constant 0 : i32
    return %c0_i32, %c0_i32_0 : i32, i32
  }
  func.func @transform_2(%arg0: i32) -> (i32, i32) {
    %c0_i32 = arith.constant 0 : i32
    %c0_i32_0 = arith.constant 0 : i32
    %c0_i32_1 = arith.constant 0 : i32
    return %c0_i32, %c0_i32_0 : i32, i32
  }
  func.func @transform_3(%arg0: i32) -> (i32, i32) {
    %c0_i32 = arith.constant 0 : i32
    %c0_i32_0 = arith.constant 0 : i32
    return %arg0, %c0_i32 : i32, i32
  }
}

module attributes {stable_mosaic.version = 11 : i64} {
  func.func @kernel(%arg0: i32, %arg1: i32, %arg2: memref<16x32xbf16, #tpu.memory_space<vmem>>, %arg3: memref<32x96xbf16, #tpu.memory_space<vmem>>, %arg4: memref<1x96xf32, #tpu.memory_space<vmem>>, %arg5: memref<16x96xbf16, #tpu.memory_space<vmem>>) attributes {dimension_semantics = [#tpu.dimension_semantics<parallel>, #tpu.dimension_semantics<parallel>], iteration_bounds = array<i64: 1, 1>, scalar_prefetch = 0 : i64, scratch_operands = 0 : i64, tpu.core_type = #tpu.core_type<tc>, window_params = [{transform_indices = @transform_0, window_bounds = array<i64: 16, 32>}, {transform_indices = @transform_1, window_bounds = array<i64: 32, 96>}, {transform_indices = @transform_2, window_bounds = array<i64: 1, 96>}, {transform_indices = @transform_3, window_bounds = array<i64: 16, 96>}]} {
    %c0 = arith.constant 0 : index
    %c0_0 = arith.constant 0 : index
    %0 = vector.load %arg2[%c0, %c0_0] : memref<16x32xbf16, #tpu.memory_space<vmem>>, vector<16x32xbf16>
    %c0_1 = arith.constant 0 : index
    %c0_2 = arith.constant 0 : index
    %1 = vector.load %arg3[%c0_1, %c0_2] : memref<32x96xbf16, #tpu.memory_space<vmem>>, vector<32x96xbf16>
    %cst = arith.constant dense<0.000000e+00> : vector<16x96xf32>
    %2 = tpu.matmul %0, %1, %cst {dimension_numbers = #tpu.dot_dimension_numbers<[1], [0], [0], [1], [0, 0, 1, 1], [], []>} : vector<16x32xbf16>, vector<32x96xbf16>, vector<16x96xf32> -> vector<16x96xf32>
    %c0_3 = arith.constant 0 : index
    %c0_4 = arith.constant 0 : index
    %3 = vector.load %arg4[%c0_3, %c0_4] : memref<1x96xf32, #tpu.memory_space<vmem>>, vector<1x96xf32>
    %4 = vector.broadcast %3 : vector<1x96xf32> to vector<16x96xf32>
    %5 = arith.addf %2, %4 : vector<16x96xf32>
    %6 = arith.truncf %5 : vector<16x96xf32> to vector<16x96xbf16>
    %c0_5 = arith.constant 0 : index
    %c0_6 = arith.constant 0 : index
    %7 = vector.load %arg5[%c0_5, %c0_6] : memref<16x96xbf16, #tpu.memory_space<vmem>>, vector<16x96xbf16>
    tpu.vector_store %arg5[%c0_5, %c0_6], %6 {strides = array<i32>} : memref<16x96xbf16, #tpu.memory_space<vmem>>, vector<16x96xbf16>,
    return
  }
  func.func @transform_0(%arg0: i32, %arg1: i32) -> (i32, i32) {
    %c0_i32 = arith.constant 0 : i32
    %c0_i32_0 = arith.constant 0 : i32
    return %arg1, %c0_i32 : i32, i32
  }
  func.func @transform_1(%arg0: i32, %arg1: i32) -> (i32, i32) {
    %c0_i32 = arith.constant 0 : i32
    %c0_i32_0 = arith.constant 0 : i32
    return %c0_i32, %arg0 : i32, i32
  }
  func.func @transform_2(%arg0: i32, %arg1: i32) -> (i32, i32) {
    %c0_i32 = arith.constant 0 : i32
    %c0_i32_0 = arith.constant 0 : i32
    return %c0_i32, %arg0 : i32, i32
  }
  func.func @transform_3(%arg0: i32, %arg1: i32) -> (i32, i32) {
    %c0_i32 = arith.constant 0 : i32
    return %arg1, %arg0 : i32, i32
  }
}

module attributes {stable_mosaic.version = 11 : i64} {
  func.func @kernel(%arg0: i32, %arg1: memref<16x32xbf16, #tpu.memory_space<vmem>>, %arg2: memref<32x32xbf16, #tpu.memory_space<vmem>>, %arg3: memref<1x32xf32, #tpu.memory_space<vmem>>, %arg4: memref<16x32xbf16, #tpu.memory_space<vmem>>, %arg5: memref<1x32xf32, #tpu.memory_space<vmem>>, %arg6: memref<1x32xf32, #tpu.memory_space<vmem>>, %arg7: memref<16x32xbf16, #tpu.memory_space<vmem>>) attributes {dimension_semantics = [#tpu.dimension_semantics<parallel>], iteration_bounds = array<i64: 1>, scalar_prefetch = 0 : i64, scratch_operands = 0 : i64, tpu.core_type = #tpu.core_type<tc>, window_params = [{transform_indices = @transform_0, window_bounds = array<i64: 16, 32>}, {pipeline_mode = #tpu.pipeline_mode<synchronous>, transform_indices = @transform_1, window_bounds = array<i64: 32, 32>}, {pipeline_mode = #tpu.pipeline_mode<synchronous>, transform_indices = @transform_2, window_bounds = array<i64: 1, 32>}, {transform_indices = @transform_3, window_bounds = array<i64: 16, 32>}, {pipeline_mode = #tpu.pipeline_mode<synchronous>, transform_indices = @transform_4, window_bounds = array<i64: 1, 32>}, {pipeline_mode = #tpu.pipeline_mode<synchronous>, transform_indices = @transform_5, window_bounds = array<i64: 1, 32>}, {transform_indices = @transform_6, window_bounds = array<i64: 16, 32>}]} {
    %c0 = arith.constant 0 : index
    %c0_0 = arith.constant 0 : index
    %0 = vector.load %arg1[%c0, %c0_0] : memref<16x32xbf16, #tpu.memory_space<vmem>>, vector<16x32xbf16>
    %c0_1 = arith.constant 0 : index
    %c0_2 = arith.constant 0 : index
    %1 = vector.load %arg2[%c0_1, %c0_2] : memref<32x32xbf16, #tpu.memory_space<vmem>>, vector<32x32xbf16>
    %cst = arith.constant dense<0.000000e+00> : vector<16x32xf32>
    %2 = tpu.matmul %0, %1, %cst {dimension_numbers = #tpu.dot_dimension_numbers<[1], [0], [0], [1], [0, 0, 1, 1], [], []>} : vector<16x32xbf16>, vector<32x32xbf16>, vector<16x32xf32> -> vector<16x32xf32>
    %c0_3 = arith.constant 0 : index
    %c0_4 = arith.constant 0 : index
    %3 = vector.load %arg3[%c0_3, %c0_4] : memref<1x32xf32, #tpu.memory_space<vmem>>, vector<1x32xf32>
    %4 = vector.broadcast %3 : vector<1x32xf32> to vector<16x32xf32>
    %5 = arith.addf %2, %4 : vector<16x32xf32>
    %c0_5 = arith.constant 0 : index
    %c0_6 = arith.constant 0 : index
    %6 = vector.load %arg4[%c0_5, %c0_6] : memref<16x32xbf16, #tpu.memory_space<vmem>>, vector<16x32xbf16>
    %7 = arith.extf %6 : vector<16x32xbf16> to vector<16x32xf32>
    %8 = arith.addf %5, %7 : vector<16x32xf32>
    %cst_7 = arith.constant dense<0.000000e+00> : vector<16xf32>
    %9 = vector.multi_reduction <add>, %8, %cst_7 [1] : vector<16x32xf32> to vector<16xf32>
    %10 = vector.shape_cast %9 : vector<16xf32> to vector<16x1xf32>
    %cst_8 = arith.constant 3.200000e+01 : f32
    %11 = vector.broadcast %cst_8 : f32 to vector<16x1xf32>
    %12 = arith.divf %10, %11 : vector<16x1xf32>
    %13 = vector.broadcast %12 : vector<16x1xf32> to vector<16x32xf32>
    %14 = arith.subf %8, %13 : vector<16x32xf32>
    %15 = arith.mulf %14, %14 : vector<16x32xf32>
    %cst_9 = arith.constant dense<0.000000e+00> : vector<16xf32>
    %16 = vector.multi_reduction <add>, %15, %cst_9 [1] : vector<16x32xf32> to vector<16xf32>
    %17 = vector.shape_cast %16 : vector<16xf32> to vector<16x1xf32>
    %cst_10 = arith.constant 3.200000e+01 : f32
    %18 = vector.broadcast %cst_10 : f32 to vector<16x1xf32>
    %19 = arith.divf %17, %18 : vector<16x1xf32>
    %20 = vector.broadcast %12 : vector<16x1xf32> to vector<16x32xf32>
    %21 = arith.subf %8, %20 : vector<16x32xf32>
    %cst_11 = arith.constant 9.99999996E-13 : f32
    %22 = vector.broadcast %cst_11 : f32 to vector<16x1xf32>
    %23 = arith.addf %19, %22 : vector<16x1xf32>
    %24 = math.rsqrt %23 : vector<16x1xf32>
    %25 = vector.broadcast %24 : vector<16x1xf32> to vector<16x32xf32>
    %26 = arith.mulf %21, %25 : vector<16x32xf32>
    %c0_12 = arith.constant 0 : index
    %c0_13 = arith.constant 0 : index
    %27 = vector.load %arg5[%c0_12, %c0_13] : memref<1x32xf32, #tpu.memory_space<vmem>>, vector<1x32xf32>
    %28 = vector.broadcast %27 : vector<1x32xf32> to vector<16x32xf32>
    %29 = arith.mulf %26, %28 : vector<16x32xf32>
    %c0_14 = arith.constant 0 : index
    %c0_15 = arith.constant 0 : index
    %30 = vector.load %arg6[%c0_14, %c0_15] : memref<1x32xf32, #tpu.memory_space<vmem>>, vector<1x32xf32>
    %31 = vector.broadcast %30 : vector<1x32xf32> to vector<16x32xf32>
    %32 = arith.addf %29, %31 : vector<16x32xf32>
    %33 = arith.truncf %32 : vector<16x32xf32> to vector<16x32xbf16>
    %c0_16 = arith.constant 0 : index
    %c0_17 = arith.constant 0 : index
    %34 = vector.load %arg7[%c0_16, %c0_17] : memref<16x32xbf16, #tpu.memory_space<vmem>>, vector<16x32xbf16>
    tpu.vector_store %arg7[%c0_16, %c0_17], %33 {strides = array<i32>} : memref<16x32xbf16, #tpu.memory_space<vmem>>, vector<16x32xbf16>,
    return
  }
  func.func @transform_0(%arg0: i32) -> (i32, i32) {
    %c0_i32 = arith.constant 0 : i32
    %c0_i32_0 = arith.constant 0 : i32
    return %arg0, %c0_i32 : i32, i32
  }
  func.func @transform_1(%arg0: i32) -> (i32, i32) {
    %c0_i32 = arith.constant 0 : i32
    %c0_i32_0 = arith.constant 0 : i32
    %c0_i32_1 = arith.constant 0 : i32
    return %c0_i32, %c0_i32_0 : i32, i32
  }
  func.func @transform_2(%arg0: i32) -> (i32, i32) {
    %c0_i32 = arith.constant 0 : i32
    %c0_i32_0 = arith.constant 0 : i32
    %c0_i32_1 = arith.constant 0 : i32
    return %c0_i32, %c0_i32_0 : i32, i32
  }
  func.func @transform_3(%arg0: i32) -> (i32, i32) {
    %c0_i32 = arith.constant 0 : i32
    %c0_i32_0 = arith.constant 0 : i32
    return %arg0, %c0_i32 : i32, i32
  }
  func.func @transform_4(%arg0: i32) -> (i32, i32) {
    %c0_i32 = arith.constant 0 : i32
    %c0_i32_0 = arith.constant 0 : i32
    %c0_i32_1 = arith.constant 0 : i32
    return %c0_i32, %c0_i32_0 : i32, i32
  }
  func.func @transform_5(%arg0: i32) -> (i32, i32) {
    %c0_i32 = arith.constant 0 : i32
    %c0_i32_0 = arith.constant 0 : i32
    %c0_i32_1 = arith.constant 0 : i32
    return %c0_i32, %c0_i32_0 : i32, i32
  }
  func.func @transform_6(%arg0: i32) -> (i32, i32) {
    %c0_i32 = arith.constant 0 : i32
    %c0_i32_0 = arith.constant 0 : i32
    return %arg0, %c0_i32 : i32, i32
  }
}

module attributes {stable_mosaic.version = 11 : i64} {
  func.func @kernel(%arg0: i32, %arg1: i32, %arg2: i32, %arg3: memref<8x32xbf16, #tpu.memory_space<vmem>>, %arg4: memref<8x32xbf16, #tpu.memory_space<vmem>>, %arg5: memref<8x32xbf16, #tpu.memory_space<vmem>>, %arg6: memref<1x1x8xf32, #tpu.memory_space<vmem>>, %arg7: memref<8x32xbf16, #tpu.memory_space<vmem>>) attributes {dimension_semantics = [#tpu.dimension_semantics<parallel>, #tpu.dimension_semantics<parallel>, #tpu.dimension_semantics<parallel>], iteration_bounds = array<i64: 2, 1, 1>, scalar_prefetch = 0 : i64, scratch_operands = 0 : i64, tpu.core_type = #tpu.core_type<tc>, window_params = [{transform_indices = @transform_0, window_bounds = array<i64: 8, 32>}, {transform_indices = @transform_1, window_bounds = array<i64: 8, 32>}, {transform_indices = @transform_2, window_bounds = array<i64: 8, 32>}, {transform_indices = @transform_3, window_bounds = array<i64: 1, 1, 8>}, {transform_indices = @transform_4, window_bounds = array<i64: 8, 32>}]} {
    %c0 = arith.constant 0 : index
    %c0_0 = arith.constant 0 : index
    %c0_1 = arith.constant 0 : index
    %0 = vector.load %arg6[%c0, %c0_0, %c0_1] : memref<1x1x8xf32, #tpu.memory_space<vmem>>, vector<1x1x8xf32>
    %1 = vector.shape_cast %0 : vector<1x1x8xf32> to vector<1x8xf32>
    %c0_2 = arith.constant 0 : index
    %c0_3 = arith.constant 0 : index
    %2 = vector.load %arg3[%c0_2, %c0_3] : memref<8x32xbf16, #tpu.memory_space<vmem>>, vector<8x8xbf16>
    %c0_4 = arith.constant 0 : index
    %c0_5 = arith.constant 0 : index
    %3 = vector.load %arg4[%c0_4, %c0_5] : memref<8x32xbf16, #tpu.memory_space<vmem>>, vector<8x8xbf16>
    %c0_6 = arith.constant 0 : index
    %c0_7 = arith.constant 0 : index
    %4 = vector.load %arg5[%c0_6, %c0_7] : memref<8x32xbf16, #tpu.memory_space<vmem>>, vector<8x8xbf16>
    %cst = arith.constant dense<0.000000e+00> : vector<8x8xf32>
    %5 = tpu.matmul %2, %3, %cst {dimension_numbers = #tpu.dot_dimension_numbers<[1], [1], [0], [0], [0, 0, 1, 0], [], []>} : vector<8x8xbf16>, vector<8x8xbf16>, vector<8x8xf32> -> vector<8x8xf32>
    %6 = vector.broadcast %1 : vector<1x8xf32> to vector<8x8xf32>
    %7 = arith.addf %5, %6 : vector<8x8xf32>
    %cst_8 = arith.constant dense<0xFF800000> : vector<8xf32>
    %8 = vector.multi_reduction <maximumf>, %7, %cst_8 [1] : vector<8x8xf32> to vector<8xf32>
    %9 = vector.shape_cast %8 : vector<8xf32> to vector<8x1xf32>
    %10 = vector.broadcast %9 : vector<8x1xf32> to vector<8x8xf32>
    %11 = arith.subf %7, %10 : vector<8x8xf32>
    %12 = math.exp %11 : vector<8x8xf32>
    %cst_9 = arith.constant dense<0.000000e+00> : vector<8xf32>
    %13 = vector.multi_reduction <add>, %12, %cst_9 [1] : vector<8x8xf32> to vector<8xf32>
    %14 = vector.shape_cast %13 : vector<8xf32> to vector<8x1xf32>
    %15 = arith.truncf %12 : vector<8x8xf32> to vector<8x8xbf16>
    %cst_10 = arith.constant dense<0.000000e+00> : vector<8x8xf32>
    %16 = tpu.matmul %15, %4, %cst_10 {dimension_numbers = #tpu.dot_dimension_numbers<[1], [0], [0], [1], [0, 0, 1, 1], [], []>} : vector<8x8xbf16>, vector<8x8xbf16>, vector<8x8xf32> -> vector<8x8xf32>
    %17 = tpu.reciprocal %14 {approx = true} : vector<8x1xf32> -> vector<8x1xf32>
    %18 = vector.broadcast %17 : vector<8x1xf32> to vector<8x8xf32>
    %19 = arith.mulf %16, %18 : vector<8x8xf32>
    %20 = arith.truncf %19 : vector<8x8xf32> to vector<8x8xbf16>
    %c0_11 = arith.constant 0 : index
    %c0_12 = arith.constant 0 : index
    %21 = vector.load %arg7[%c0_11, %c0_12] : memref<8x32xbf16, #tpu.memory_space<vmem>>, vector<8x8xbf16>
    tpu.vector_store %arg7[%c0_11, %c0_12], %20 {strides = array<i32>} : memref<8x32xbf16, #tpu.memory_space<vmem>>, vector<8x8xbf16>,
    %c0_13 = arith.constant 0 : index
    %c8 = arith.constant 8 : index
    %22 = vector.load %arg3[%c0_13, %c8] : memref<8x32xbf16, #tpu.memory_space<vmem>>, vector<8x8xbf16>
    %c0_14 = arith.constant 0 : index
    %c8_15 = arith.constant 8 : index
    %23 = vector.load %arg4[%c0_14, %c8_15] : memref<8x32xbf16, #tpu.memory_space<vmem>>, vector<8x8xbf16>
    %c0_16 = arith.constant 0 : index
    %c8_17 = arith.constant 8 : index
    %24 = vector.load %arg5[%c0_16, %c8_17] : memref<8x32xbf16, #tpu.memory_space<vmem>>, vector<8x8xbf16>
    %cst_18 = arith.constant dense<0.000000e+00> : vector<8x8xf32>
    %25 = tpu.matmul %22, %23, %cst_18 {dimension_numbers = #tpu.dot_dimension_numbers<[1], [1], [0], [0], [0, 0, 1, 0], [], []>} : vector<8x8xbf16>, vector<8x8xbf16>, vector<8x8xf32> -> vector<8x8xf32>
    %26 = vector.broadcast %1 : vector<1x8xf32> to vector<8x8xf32>
    %27 = arith.addf %25, %26 : vector<8x8xf32>
    %cst_19 = arith.constant dense<0xFF800000> : vector<8xf32>
    %28 = vector.multi_reduction <maximumf>, %27, %cst_19 [1] : vector<8x8xf32> to vector<8xf32>
    %29 = vector.shape_cast %28 : vector<8xf32> to vector<8x1xf32>
    %30 = vector.broadcast %29 : vector<8x1xf32> to vector<8x8xf32>
    %31 = arith.subf %27, %30 : vector<8x8xf32>
    %32 = math.exp %31 : vector<8x8xf32>
    %cst_20 = arith.constant dense<0.000000e+00> : vector<8xf32>
    %33 = vector.multi_reduction <add>, %32, %cst_20 [1] : vector<8x8xf32> to vector<8xf32>
    %34 = vector.shape_cast %33 : vector<8xf32> to vector<8x1xf32>
    %35 = arith.truncf %32 : vector<8x8xf32> to vector<8x8xbf16>
    %cst_21 = arith.constant dense<0.000000e+00> : vector<8x8xf32>
    %36 = tpu.matmul %35, %24, %cst_21 {dimension_numbers = #tpu.dot_dimension_numbers<[1], [0], [0], [1], [0, 0, 1, 1], [], []>} : vector<8x8xbf16>, vector<8x8xbf16>, vector<8x8xf32> -> vector<8x8xf32>
    %37 = tpu.reciprocal %34 {approx = true} : vector<8x1xf32> -> vector<8x1xf32>
    %38 = vector.broadcast %37 : vector<8x1xf32> to vector<8x8xf32>
    %39 = arith.mulf %36, %38 : vector<8x8xf32>
    %40 = arith.truncf %39 : vector<8x8xf32> to vector<8x8xbf16>
    %c0_22 = arith.constant 0 : index
    %c8_23 = arith.constant 8 : index
    %41 = vector.load %arg7[%c0_22, %c8_23] : memref<8x32xbf16, #tpu.memory_space<vmem>>, vector<8x8xbf16>
    tpu.vector_store %arg7[%c0_22, %c8_23], %40 {strides = array<i32>} : memref<8x32xbf16, #tpu.memory_space<vmem>>, vector<8x8xbf16>,
    %c0_24 = arith.constant 0 : index
    %c16 = arith.constant 16 : index
    %42 = vector.load %arg3[%c0_24, %c16] : memref<8x32xbf16, #tpu.memory_space<vmem>>, vector<8x8xbf16>
    %c0_25 = arith.constant 0 : index
    %c16_26 = arith.constant 16 : index
    %43 = vector.load %arg4[%c0_25, %c16_26] : memref<8x32xbf16, #tpu.memory_space<vmem>>, vector<8x8xbf16>
    %c0_27 = arith.constant 0 : index
    %c16_28 = arith.constant 16 : index
    %44 = vector.load %arg5[%c0_27, %c16_28] : memref<8x32xbf16, #tpu.memory_space<vmem>>, vector<8x8xbf16>
    %cst_29 = arith.constant dense<0.000000e+00> : vector<8x8xf32>
    %45 = tpu.matmul %42, %43, %cst_29 {dimension_numbers = #tpu.dot_dimension_numbers<[1], [1], [0], [0], [0, 0, 1, 0], [], []>} : vector<8x8xbf16>, vector<8x8xbf16>, vector<8x8xf32> -> vector<8x8xf32>
    %46 = vector.broadcast %1 : vector<1x8xf32> to vector<8x8xf32>
    %47 = arith.addf %45, %46 : vector<8x8xf32>
    %cst_30 = arith.constant dense<0xFF800000> : vector<8xf32>
    %48 = vector.multi_reduction <maximumf>, %47, %cst_30 [1] : vector<8x8xf32> to vector<8xf32>
    %49 = vector.shape_cast %48 : vector<8xf32> to vector<8x1xf32>
    %50 = vector.broadcast %49 : vector<8x1xf32> to vector<8x8xf32>
    %51 = arith.subf %47, %50 : vector<8x8xf32>
    %52 = math.exp %51 : vector<8x8xf32>
    %cst_31 = arith.constant dense<0.000000e+00> : vector<8xf32>
    %53 = vector.multi_reduction <add>, %52, %cst_31 [1] : vector<8x8xf32> to vector<8xf32>
    %54 = vector.shape_cast %53 : vector<8xf32> to vector<8x1xf32>
    %55 = arith.truncf %52 : vector<8x8xf32> to vector<8x8xbf16>
    %cst_32 = arith.constant dense<0.000000e+00> : vector<8x8xf32>
    %56 = tpu.matmul %55, %44, %cst_32 {dimension_numbers = #tpu.dot_dimension_numbers<[1], [0], [0], [1], [0, 0, 1, 1], [], []>} : vector<8x8xbf16>, vector<8x8xbf16>, vector<8x8xf32> -> vector<8x8xf32>
    %57 = tpu.reciprocal %54 {approx = true} : vector<8x1xf32> -> vector<8x1xf32>
    %58 = vector.broadcast %57 : vector<8x1xf32> to vector<8x8xf32>
    %59 = arith.mulf %56, %58 : vector<8x8xf32>
    %60 = arith.truncf %59 : vector<8x8xf32> to vector<8x8xbf16>
    %c0_33 = arith.constant 0 : index
    %c16_34 = arith.constant 16 : index
    %61 = vector.load %arg7[%c0_33, %c16_34] : memref<8x32xbf16, #tpu.memory_space<vmem>>, vector<8x8xbf16>
    tpu.vector_store %arg7[%c0_33, %c16_34], %60 {strides = array<i32>} : memref<8x32xbf16, #tpu.memory_space<vmem>>, vector<8x8xbf16>,
    %c0_35 = arith.constant 0 : index
    %c24 = arith.constant 24 : index
    %62 = vector.load %arg3[%c0_35, %c24] : memref<8x32xbf16, #tpu.memory_space<vmem>>, vector<8x8xbf16>
    %c0_36 = arith.constant 0 : index
    %c24_37 = arith.constant 24 : index
    %63 = vector.load %arg4[%c0_36, %c24_37] : memref<8x32xbf16, #tpu.memory_space<vmem>>, vector<8x8xbf16>
    %c0_38 = arith.constant 0 : index
    %c24_39 = arith.constant 24 : index
    %64 = vector.load %arg5[%c0_38, %c24_39] : memref<8x32xbf16, #tpu.memory_space<vmem>>, vector<8x8xbf16>
    %cst_40 = arith.constant dense<0.000000e+00> : vector<8x8xf32>
    %65 = tpu.matmul %62, %63, %cst_40 {dimension_numbers = #tpu.dot_dimension_numbers<[1], [1], [0], [0], [0, 0, 1, 0], [], []>} : vector<8x8xbf16>, vector<8x8xbf16>, vector<8x8xf32> -> vector<8x8xf32>
    %66 = vector.broadcast %1 : vector<1x8xf32> to vector<8x8xf32>
    %67 = arith.addf %65, %66 : vector<8x8xf32>
    %cst_41 = arith.constant dense<0xFF800000> : vector<8xf32>
    %68 = vector.multi_reduction <maximumf>, %67, %cst_41 [1] : vector<8x8xf32> to vector<8xf32>
    %69 = vector.shape_cast %68 : vector<8xf32> to vector<8x1xf32>
    %70 = vector.broadcast %69 : vector<8x1xf32> to vector<8x8xf32>
    %71 = arith.subf %67, %70 : vector<8x8xf32>
    %72 = math.exp %71 : vector<8x8xf32>
    %cst_42 = arith.constant dense<0.000000e+00> : vector<8xf32>
    %73 = vector.multi_reduction <add>, %72, %cst_42 [1] : vector<8x8xf32> to vector<8xf32>
    %74 = vector.shape_cast %73 : vector<8xf32> to vector<8x1xf32>
    %75 = arith.truncf %72 : vector<8x8xf32> to vector<8x8xbf16>
    %cst_43 = arith.constant dense<0.000000e+00> : vector<8x8xf32>
    %76 = tpu.matmul %75, %64, %cst_43 {dimension_numbers = #tpu.dot_dimension_numbers<[1], [0], [0], [1], [0, 0, 1, 1], [], []>} : vector<8x8xbf16>, vector<8x8xbf16>, vector<8x8xf32> -> vector<8x8xf32>
    %77 = tpu.reciprocal %74 {approx = true} : vector<8x1xf32> -> vector<8x1xf32>
    %78 = vector.broadcast %77 : vector<8x1xf32> to vector<8x8xf32>
    %79 = arith.mulf %76, %78 : vector<8x8xf32>
    %80 = arith.truncf %79 : vector<8x8xf32> to vector<8x8xbf16>
    %c0_44 = arith.constant 0 : index
    %c24_45 = arith.constant 24 : index
    %81 = vector.load %arg7[%c0_44, %c24_45] : memref<8x32xbf16, #tpu.memory_space<vmem>>, vector<8x8xbf16>
    tpu.vector_store %arg7[%c0_44, %c24_45], %80 {strides = array<i32>} : memref<8x32xbf16, #tpu.memory_space<vmem>>, vector<8x8xbf16>,
    return
  }
  func.func @transform_0(%arg0: i32, %arg1: i32, %arg2: i32) -> (i32, i32) {
    %c1_i32 = arith.constant 1 : i32
    %0 = arith.muli %arg0, %c1_i32 : i32
    %1 = arith.addi %0, %arg2 : i32
    %c0_i32 = arith.constant 0 : i32
    %2 = arith.addi %c0_i32, %arg1 : i32
    %c0_i32_0 = arith.constant 0 : i32
    return %1, %2 : i32, i32
  }
  func.func @transform_1(%arg0: i32, %arg1: i32, %arg2: i32) -> (i32, i32) {
    %c0_i32 = arith.constant 0 : i32
    %0 = arith.addi %c0_i32, %arg1 : i32
    %c0_i32_0 = arith.constant 0 : i32
    return %arg0, %0 : i32, i32
  }
  func.func @transform_2(%arg0: i32, %arg1: i32, %arg2: i32) -> (i32, i32) {
    %c0_i32 = arith.constant 0 : i32
    %0 = arith.addi %c0_i32, %arg1 : i32
    %c0_i32_0 = arith.constant 0 : i32
    return %arg0, %0 : i32, i32
  }
  func.func @transform_3(%arg0: i32, %arg1: i32, %arg2: i32) -> (i32, i32, i32) {
    %c0_i32 = arith.constant 0 : i32
    %c0_i32_0 = arith.constant 0 : i32
    %c0_i32_1 = arith.constant 0 : i32
    return %arg0, %c0_i32, %c0_i32_0 : i32, i32, i32
  }
  func.func @transform_4(%arg0: i32, %arg1: i32, %arg2: i32) -> (i32, i32) {
    %c1_i32 = arith.constant 1 : i32
    %0 = arith.muli %arg0, %c1_i32 : i32
    %1 = arith.addi %0, %arg2 : i32
    %c0_i32 = arith.constant 0 : i32
    return %1, %arg1 : i32, i32
  }
}

module attributes {stable_mosaic.version = 11 : i64} {
  func.func @kernel(%arg0: i32, %arg1: i32, %arg2: memref<16x32xbf16, #tpu.memory_space<vmem>>, %arg3: memref<32x64xbf16, #tpu.memory_space<vmem>>, %arg4: memref<1x64xf32, #tpu.memory_space<vmem>>, %arg5: memref<16x64xbf16, #tpu.memory_space<vmem>>) attributes {dimension_semantics = [#tpu.dimension_semantics<parallel>, #tpu.dimension_semantics<parallel>], iteration_bounds = array<i64: 1, 1>, scalar_prefetch = 0 : i64, scratch_operands = 0 : i64, tpu.core_type = #tpu.core_type<tc>, window_params = [{transform_indices = @transform_0, window_bounds = array<i64: 16, 32>}, {transform_indices = @transform_1, window_bounds = array<i64: 32, 64>}, {transform_indices = @transform_2, window_bounds = array<i64: 1, 64>}, {transform_indices = @transform_3, window_bounds = array<i64: 16, 64>}]} {
    %c0 = arith.constant 0 : index
    %c0_0 = arith.constant 0 : index
    %0 = vector.load %arg2[%c0, %c0_0] : memref<16x32xbf16, #tpu.memory_space<vmem>>, vector<16x32xbf16>
    %c0_1 = arith.constant 0 : index
    %c0_2 = arith.constant 0 : index
    %1 = vector.load %arg3[%c0_1, %c0_2] : memref<32x64xbf16, #tpu.memory_space<vmem>>, vector<32x64xbf16>
    %cst = arith.constant dense<0.000000e+00> : vector<16x64xf32>
    %2 = tpu.matmul %0, %1, %cst {dimension_numbers = #tpu.dot_dimension_numbers<[1], [0], [0], [1], [0, 0, 1, 1], [], []>} : vector<16x32xbf16>, vector<32x64xbf16>, vector<16x64xf32> -> vector<16x64xf32>
    %c0_3 = arith.constant 0 : index
    %c0_4 = arith.constant 0 : index
    %3 = vector.load %arg4[%c0_3, %c0_4] : memref<1x64xf32, #tpu.memory_space<vmem>>, vector<1x64xf32>
    %4 = vector.broadcast %3 : vector<1x64xf32> to vector<16x64xf32>
    %5 = arith.addf %2, %4 : vector<16x64xf32>
    %cst_5 = arith.constant 5.000000e-01 : f32
    %6 = vector.broadcast %cst_5 : f32 to vector<16x64xf32>
    %7 = arith.mulf %6, %5 : vector<16x64xf32>
    %cst_6 = arith.constant 0.707106769 : f32
    %8 = vector.broadcast %cst_6 : f32 to vector<16x64xf32>
    %9 = arith.mulf %5, %8 : vector<16x64xf32>
    %10 = math.erf %9 : vector<16x64xf32>
    %cst_7 = arith.constant 1.000000e+00 : f32
    %11 = vector.broadcast %cst_7 : f32 to vector<16x64xf32>
    %12 = arith.addf %11, %10 : vector<16x64xf32>
    %13 = arith.mulf %7, %12 : vector<16x64xf32>
    %14 = arith.truncf %13 : vector<16x64xf32> to vector<16x64xbf16>
    %c0_8 = arith.constant 0 : index
    %c0_9 = arith.constant 0 : index
    %15 = vector.load %arg5[%c0_8, %c0_9] : memref<16x64xbf16, #tpu.memory_space<vmem>>, vector<16x64xbf16>
    tpu.vector_store %arg5[%c0_8, %c0_9], %14 {strides = array<i32>} : memref<16x64xbf16, #tpu.memory_space<vmem>>, vector<16x64xbf16>,
    return
  }
  func.func @transform_0(%arg0: i32, %arg1: i32) -> (i32, i32) {
    %c0_i32 = arith.constant 0 : i32
    %c0_i32_0 = arith.constant 0 : i32
    return %arg1, %c0_i32 : i32, i32
  }
  func.func @transform_1(%arg0: i32, %arg1: i32) -> (i32, i32) {
    %c0_i32 = arith.constant 0 : i32
    %c0_i32_0 = arith.constant 0 : i32
    return %c0_i32, %arg0 : i32, i32
  }
  func.func @transform_2(%arg0: i32, %arg1: i32) -> (i32, i32) {
    %c0_i32 = arith.constant 0 : i32
    %c0_i32_0 = arith.constant 0 : i32
    return %c0_i32, %arg0 : i32, i32
  }
  func.func @transform_3(%arg0: i32, %arg1: i32) -> (i32, i32) {
    %c0_i32 = arith.constant 0 : i32
    return %arg1, %arg0 : i32, i32
  }
}

module attributes {stable_mosaic.version = 11 : i64} {
  func.func @kernel(%arg0: i32, %arg1: memref<16x64xbf16, #tpu.memory_space<vmem>>, %arg2: memref<64x32xbf16, #tpu.memory_space<vmem>>, %arg3: memref<1x32xf32, #tpu.memory_space<vmem>>, %arg4: memref<16x32xbf16, #tpu.memory_space<vmem>>, %arg5: memref<1x32xf32, #tpu.memory_space<vmem>>, %arg6: memref<1x32xf32, #tpu.memory_space<vmem>>, %arg7: memref<16x32xbf16, #tpu.memory_space<vmem>>) attributes {dimension_semantics = [#tpu.dimension_semantics<parallel>], iteration_bounds = array<i64: 1>, scalar_prefetch = 0 : i64, scratch_operands = 0 : i64, tpu.core_type = #tpu.core_type<tc>, window_params = [{transform_indices = @transform_0, window_bounds = array<i64: 16, 64>}, {pipeline_mode = #tpu.pipeline_mode<synchronous>, transform_indices = @transform_1, window_bounds = array<i64: 64, 32>}, {pipeline_mode = #tpu.pipeline_mode<synchronous>, transform_indices = @transform_2, window_bounds = array<i64: 1, 32>}, {transform_indices = @transform_3, window_bounds = array<i64: 16, 32>}, {pipeline_mode = #tpu.pipeline_mode<synchronous>, transform_indices = @transform_4, window_bounds = array<i64: 1, 32>}, {pipeline_mode = #tpu.pipeline_mode<synchronous>, transform_indices = @transform_5, window_bounds = array<i64: 1, 32>}, {transform_indices = @transform_6, window_bounds = array<i64: 16, 32>}]} {
    %c0 = arith.constant 0 : index
    %c0_0 = arith.constant 0 : index
    %0 = vector.load %arg1[%c0, %c0_0] : memref<16x64xbf16, #tpu.memory_space<vmem>>, vector<16x64xbf16>
    %c0_1 = arith.constant 0 : index
    %c0_2 = arith.constant 0 : index
    %1 = vector.load %arg2[%c0_1, %c0_2] : memref<64x32xbf16, #tpu.memory_space<vmem>>, vector<64x32xbf16>
    %cst = arith.constant dense<0.000000e+00> : vector<16x32xf32>
    %2 = tpu.matmul %0, %1, %cst {dimension_numbers = #tpu.dot_dimension_numbers<[1], [0], [0], [1], [0, 0, 1, 1], [], []>} : vector<16x64xbf16>, vector<64x32xbf16>, vector<16x32xf32> -> vector<16x32xf32>
    %c0_3 = arith.constant 0 : index
    %c0_4 = arith.constant 0 : index
    %3 = vector.load %arg3[%c0_3, %c0_4] : memref<1x32xf32, #tpu.memory_space<vmem>>, vector<1x32xf32>
    %4 = vector.broadcast %3 : vector<1x32xf32> to vector<16x32xf32>
    %5 = arith.addf %2, %4 : vector<16x32xf32>
    %c0_5 = arith.constant 0 : index
    %c0_6 = arith.constant 0 : index
    %6 = vector.load %arg4[%c0_5, %c0_6] : memref<16x32xbf16, #tpu.memory_space<vmem>>, vector<16x32xbf16>
    %7 = arith.extf %6 : vector<16x32xbf16> to vector<16x32xf32>
    %8 = arith.addf %5, %7 : vector<16x32xf32>
    %cst_7 = arith.constant dense<0.000000e+00> : vector<16xf32>
    %9 = vector.multi_reduction <add>, %8, %cst_7 [1] : vector<16x32xf32> to vector<16xf32>
    %10 = vector.shape_cast %9 : vector<16xf32> to vector<16x1xf32>
    %cst_8 = arith.constant 3.200000e+01 : f32
    %11 = vector.broadcast %cst_8 : f32 to vector<16x1xf32>
    %12 = arith.divf %10, %11 : vector<16x1xf32>
    %13 = vector.broadcast %12 : vector<16x1xf32> to vector<16x32xf32>
    %14 = arith.subf %8, %13 : vector<16x32xf32>
    %15 = arith.mulf %14, %14 : vector<16x32xf32>
    %cst_9 = arith.constant dense<0.000000e+00> : vector<16xf32>
    %16 = vector.multi_reduction <add>, %15, %cst_9 [1] : vector<16x32xf32> to vector<16xf32>
    %17 = vector.shape_cast %16 : vector<16xf32> to vector<16x1xf32>
    %cst_10 = arith.constant 3.200000e+01 : f32
    %18 = vector.broadcast %cst_10 : f32 to vector<16x1xf32>
    %19 = arith.divf %17, %18 : vector<16x1xf32>
    %20 = vector.broadcast %12 : vector<16x1xf32> to vector<16x32xf32>
    %21 = arith.subf %8, %20 : vector<16x32xf32>
    %cst_11 = arith.constant 9.99999996E-13 : f32
    %22 = vector.broadcast %cst_11 : f32 to vector<16x1xf32>
    %23 = arith.addf %19, %22 : vector<16x1xf32>
    %24 = math.rsqrt %23 : vector<16x1xf32>
    %25 = vector.broadcast %24 : vector<16x1xf32> to vector<16x32xf32>
    %26 = arith.mulf %21, %25 : vector<16x32xf32>
    %c0_12 = arith.constant 0 : index
    %c0_13 = arith.constant 0 : index
    %27 = vector.load %arg5[%c0_12, %c0_13] : memref<1x32xf32, #tpu.memory_space<vmem>>, vector<1x32xf32>
    %28 = vector.broadcast %27 : vector<1x32xf32> to vector<16x32xf32>
    %29 = arith.mulf %26, %28 : vector<16x32xf32>
    %c0_14 = arith.constant 0 : index
    %c0_15 = arith.constant 0 : index
    %30 = vector.load %arg6[%c0_14, %c0_15] : memref<1x32xf32, #tpu.memory_space<vmem>>, vector<1x32xf32>
    %31 = vector.broadcast %30 : vector<1x32xf32> to vector<16x32xf32>
    %32 = arith.addf %29, %31 : vector<16x32xf32>
    %33 = arith.truncf %32 : vector<16x32xf32> to vector<16x32xbf16>
    %c0_16 = arith.constant 0 : index
    %c0_17 = arith.constant 0 : index
    %34 = vector.load %arg7[%c0_16, %c0_17] : memref<16x32xbf16, #tpu.memory_space<vmem>>, vector<16x32xbf16>
    tpu.vector_store %arg7[%c0_16, %c0_17], %33 {strides = array<i32>} : memref<16x32xbf16, #tpu.memory_space<vmem>>, vector<16x32xbf16>,
    return
  }
  func.func @transform_0(%arg0: i32) -> (i32, i32) {
    %c0_i32 = arith.constant 0 : i32
    %c0_i32_0 = arith.constant 0 : i32
    return %arg0, %c0_i32 : i32, i32
  }
  func.func @transform_1(%arg0: i32) -> (i32, i32) {
    %c0_i32 = arith.constant 0 : i32
    %c0_i32_0 = arith.constant 0 : i32
    %c0_i32_1 = arith.constant 0 : i32
    return %c0_i32, %c0_i32_0 : i32, i32
  }
  func.func @transform_2(%arg0: i32) -> (i32, i32) {
    %c0_i32 = arith.constant 0 : i32
    %c0_i32_0 = arith.constant 0 : i32
    %c0_i32_1 = arith.constant 0 : i32
    return %c0_i32, %c0_i32_0 : i32, i32
  }
  func.func @transform_3(%arg0: i32) -> (i32, i32) {
    %c0_i32 = arith.constant 0 : i32
    %c0_i32_0 = arith.constant 0 : i32
    return %arg0, %c0_i32 : i32, i32
  }
  func.func @transform_4(%arg0: i32) -> (i32, i32) {
    %c0_i32 = arith.constant 0 : i32
    %c0_i32_0 = arith.constant 0 : i32
    %c0_i32_1 = arith.constant 0 : i32
    return %c0_i32, %c0_i32_0 : i32, i32
  }
  func.func @transform_5(%arg0: i32) -> (i32, i32) {
    %c0_i32 = arith.constant 0 : i32
    %c0_i32_0 = arith.constant 0 : i32
    %c0_i32_1 = arith.constant 0 : i32
    return %c0_i32, %c0_i32_0 : i32, i32
  }
  func.func @transform_6(%arg0: i32) -> (i32, i32) {
    %c0_i32 = arith.constant 0 : i32
    %c0_i32_0 = arith.constant 0 : i32
    return %arg0, %c0_i32 : i32, i32
  }
}

</mosaic_0001>

<llo_original>
// kernel: _lambda_.12
$region0: #{_lambda_.12}
  #allocation0 [shape = 'u32[]', space=smem, size = 0x4, offset = 0x4, fixed_abs, tag = 'smem constant byte address 0x4 - core index']
  #allocation1 [shape = 'u32[144,128]{1,0:T(1,128)}', space=vmem, size = 0x12000, scoped, tag = 'internal scratch']
  %s0 = inlined_call_operand.vmem [shape: bf16[16,32], index: 0, kind: input, shape index: {}]
  %s1 = inlined_call_operand.vmem [shape: bf16[32,96], index: 1, kind: input, shape index: {}]
  %s2 = inlined_call_operand.vmem [shape: f32[1,96], index: 2, kind: input, shape index: {}]
  %s3 = inlined_call_operand.vmem [shape: bf16[16,96], index: 3, kind: output, shape index: {}]
  %s4 = sld [smem:[#allocation0]]
  $region22: #{_lambda_.12} parent=0
    _
  %s6 = ssub.s32 1, %s4
  %s7 = scalar_select 0, %s6, %s4
  // Predicated region
  $region2: #{_lambda_.12} parent=0 // pred_check
    _
  $region3: #{_lambda_.12} parent=0 // pred_check_branch
    %9 = sbr.rel (0) target = $region5
  $region4: #{_lambda_.12} parent=0 // pred_region
    _
  $region5: #{_lambda_.12} parent=0 // pred_fallthru
    _
  // Predicated region
  $region6: #{_lambda_.12} parent=0 // pred_check
    _
  $region7: #{_lambda_.12} parent=0 // pred_check_branch
    %11 = sbr.rel (0) target = $region9
  $region8: #{_lambda_.12} parent=0 // pred_region
    _
  $region9: #{_lambda_.12} parent=0 // pred_fallthru
    _
  // Predicated region
  $region10: #{_lambda_.12} parent=0 // pred_check
    _
  $region11: #{_lambda_.12} parent=0 // pred_check_branch
    %13 = sbr.rel (0) target = $region13
  $region12: #{_lambda_.12} parent=0 // pred_region
    _
  $region13: #{_lambda_.12} parent=0 // pred_fallthru
    _
  %v15 = vld [vmem:[%s0] sm:$0xf]
  %v16 = vld [vmem:[%s0 + $0x4] sm:$0xf]
  %v17 = vld [vmem:[%s1] sm:$0xf]
  %v18 = vld [vmem:[%s1 + $0x4] sm:$0xf]
  %v19 = vld [vmem:[%s1 + $0x8] sm:$0xf]
  %v20 = vld [vmem:[%s1 + $0xc] sm:$0xf]
  %v21 = vld [vmem:[%s2] sm:$0x1]
  %v23 = vlaneseq
  %v24 = vshrl.u32 %v23, 7
  %v25 = vsub.s32 0, %v24
  %v26 = vrot.slane %v21, %v25
  %v30 = vunpack.c.l.b16 %v15
  %v31 = vunpack.c.l.b16 %v16
  %v32 = vpack.c.b16 %v31, %v30
  %v37 = vunpack.c.l.b16 %v17
  %v38 = vunpack.c.l.b16 %v18
  %v39 = vunpack.c.l.b16 %v19
  %v40 = vunpack.c.l.b16 %v20
  %v41 = vpack.c.b16 %v38, %v37
  %v42 = vpack.c.b16 %v40, %v39
  %vm45 = vcmask 261120
  %v47 = vsel %vm45, %v32, 0
  %49 = vmatprep.subr.bf16.mxu0 0
  %50 = vmatpush1.bf16.msra.mxu0 0
  %51 = vmatprep.subr.bf16.mxu0 0
  %52 = vmatpush1.bf16.msra.mxu0 0
  %53 = vmatprep.subr.bf16.mxu0 0
  %54 = vmatpush1.bf16.msra.mxu0 0
  %55 = vmatprep.subr.bf16.mxu0 0
  %56 = vmatpush1.bf16.msra.mxu0 0
  %57 = vmatprep.subr.bf16.mxu0 0
  %58 = vmatpush1.bf16.msra.mxu0 0
  %59 = vmatprep.subr.bf16.mxu0 0
  %60 = vmatpush1.bf16.msra.mxu0 0
  %61 = vmatprep.subr.bf16.mxu0 0
  %62 = vmatpush1.bf16.msra.mxu0 %v42
  %63 = vmatprep.subr.bf16.mxu0 0
  %64 = vmatpush1.bf16.msra.mxu0 %v41
  %65 = vmatprep.subr.bf16.mxu0 0
  %66 = vmatpush2.bf16.msra.mxu0 0
  %67 = vmatprep.subr.bf16.mxu0 0
  %68 = vmatpush2.bf16.msra.mxu0 0
  %69 = vmatprep.subr.bf16.mxu0 0
  %70 = vmatpush2.bf16.msra.mxu0 0
  %71 = vmatprep.subr.bf16.mxu0 0
  %72 = vmatpush2.bf16.msra.mxu0 0
  %73 = vmatprep.subr.bf16.mxu0 0
  %74 = vmatpush2.bf16.msra.mxu0 0
  %75 = vmatprep.subr.bf16.mxu0 0
  %76 = vmatpush2.bf16.msra.mxu0 0
  %77 = vmatprep.subr.bf16.mxu0 0
  %78 = vmatpush2.bf16.msra.mxu0 0
  %79 = vmatprep.subr.bf16.mxu0 0
  %80 = vmatpush2.bf16.msra.mxu0 0
  %81 = vmatprep.mubr.bf16.mxu0 0
  %82 = vmatmul.mubr.bf16.gmra.mxu0 %v47
  %v83 = vpop.f32.mrf.mxu0
  %v84 = vadd.f32 %v26, %v83
  %v85 = vpop.f32.mrf.mxu0
  %v86 = vpop.f32.mrf.mxu0
  %v87 = vadd.f32 %v26, %v86
  %v88 = vpop.f32.mrf.mxu0
  %89 = vdwg.mxu0
  %v90 = vpack.c.bf16 %v87, %v84
  %v92 = vunpack.c.l.b16 %v90
  %v93 = vunpack.c.h.b16 %v90
  %v94 = vpack.c.b16 %v92, %v92
  %v95 = vpack.c.b16 %v93, %v93
  %vm98 = vcmask 781312
  %99 = vst.msk [vmem:[%s3] sm:$0xf] %vm98, %v94
  %100 = vst.msk [vmem:[%s3 + $0x4] sm:$0xf] %vm98, %v95
  // Predicated region
  $region14: #{_lambda_.12} parent=0 // pred_check
    _
  $region15: #{_lambda_.12} parent=0 // pred_check_branch
    %102 = sbr.rel (0) target = $region17
  $region16: #{_lambda_.12} parent=0 // pred_region
    _
  $region17: #{_lambda_.12} parent=0 // pred_fallthru
    _
  // Predicated region
  $region18: #{_lambda_.12} parent=0 // pred_check
    _
  $region19: #{_lambda_.12} parent=0 // pred_check_branch
    %104 = sbr.rel (0) target = $region21
  $region20: #{_lambda_.12} parent=0 // pred_region
    _
  $region21: #{_lambda_.12} parent=0 // pred_fallthru
    _

// kernel: _lambda_.11
$region0: #{_lambda_.11}
  #allocation0 [shape = 'u32[]', space=smem, size = 0x4, offset = 0x4, fixed_abs, tag = 'smem constant byte address 0x4 - core index']
  #allocation1 [shape = 'u32[144,128]{1,0:T(1,128)}', space=vmem, size = 0x12000, scoped, tag = 'internal scratch']
  %s0 = inlined_call_operand.vmem [shape: f32[16,32], index: 0, kind: input, shape index: {}]
  %s1 = inlined_call_operand.vmem [shape: f32[1,32], index: 1, kind: input, shape index: {}]
  %s2 = inlined_call_operand.vmem [shape: f32[1,32], index: 2, kind: input, shape index: {}]
  %s3 = inlined_call_operand.vmem [shape: bf16[16,32], index: 3, kind: output, shape index: {}]
  %s4 = sld [smem:[#allocation0]]
  $region22: #{_lambda_.11} parent=0
    _
  %s6 = ssub.s32 1, %s4
  %s7 = scalar_select 0, %s6, %s4
  // Predicated region
  $region2: #{_lambda_.11} parent=0 // pred_check
    _
  $region3: #{_lambda_.11} parent=0 // pred_check_branch
    %9 = sbr.rel (0) target = $region5
  $region4: #{_lambda_.11} parent=0 // pred_region
    _
  $region5: #{_lambda_.11} parent=0 // pred_fallthru
    _
  // Predicated region
  $region6: #{_lambda_.11} parent=0 // pred_check
    _
  $region7: #{_lambda_.11} parent=0 // pred_check_branch
    %11 = sbr.rel (0) target = $region9
  $region8: #{_lambda_.11} parent=0 // pred_region
    _
  $region9: #{_lambda_.11} parent=0 // pred_fallthru
    _
  // Predicated region
  $region10: #{_lambda_.11} parent=0 // pred_check
    _
  $region11: #{_lambda_.11} parent=0 // pred_check_branch
    %13 = sbr.rel (0) target = $region13
  $region12: #{_lambda_.11} parent=0 // pred_region
    _
  $region13: #{_lambda_.11} parent=0 // pred_fallthru
    _
  %v14 = vld [vmem:[%s0] sm:$0xff]
  %v15 = vld [vmem:[%s0 + $0x8] sm:$0xff]
  %vm16 = vcmask 261120
  %v17 = vsel %vm16, %v14, 0.0
  %18 = vadd.xlane.f32.xlu0 %v17
  %v19 = vpop.xlane.xlu0 %18
  %v20 = vsel %vm16, %v15, 0.0
  %21 = vadd.xlane.f32.xlu0 %v20
  %v22 = vpop.xlane.xlu0 %21
  %v23 = vrcp.pop 32.0
  %v24 = vmul.f32 %v19, %v23
  %v25 = vmul.f32 %v22, %v23
  %v26 = vsub.f32 %v14, %v24
  %v27 = vsub.f32 %v15, %v25
  %v28 = vmul.f32 %v26, %v26
  %v29 = vmul.f32 %v27, %v27
  %v30 = vsel %vm16, %v28, 0.0
  %31 = vadd.xlane.f32.xlu0 %v30
  %v32 = vpop.xlane.xlu0 %31
  %v33 = vsel %vm16, %v29, 0.0
  %34 = vadd.xlane.f32.xlu0 %v33
  %v35 = vpop.xlane.xlu0 %34
  %v36 = vmul.f32 %v32, %v23
  %v37 = vmul.f32 %v35, %v23
  %v38 = vadd.f32 %v36, 1e-12
  %v39 = vadd.f32 %v37, 1e-12
  %v40 = vrsqrt.pop %v38
  %v41 = vrsqrt.pop %v39
  %v42 = vmul.f32 %v26, %v40
  %v43 = vmul.f32 %v27, %v41
  %v44 = vld [vmem:[%s1] sm:$0x1]
  %v46 = vlaneseq
  %v47 = vshrl.u32 %v46, 7
  %v48 = vsub.s32 0, %v47
  %v49 = vrot.slane %v44, %v48
  %v51 = vmul.f32 %v42, %v49
  %v52 = vmul.f32 %v43, %v49
  %v53 = vld [vmem:[%s2] sm:$0x1]
  %v55 = vlaneseq
  %v56 = vshrl.u32 %v55, 7
  %v57 = vsub.s32 0, %v56
  %v58 = vrot.slane %v53, %v57
  %v60 = vadd.f32 %v51, %v58
  %v61 = vadd.f32 %v52, %v58
  %v62 = vpack.c.bf16 %v61, %v60
  %v64 = vunpack.c.l.b16 %v62
  %v65 = vunpack.c.h.b16 %v62
  %v66 = vpack.c.b16 %v64, %v64
  %v67 = vpack.c.b16 %v65, %v65
  %vm70 = vcmask 257024
  %71 = vst.msk [vmem:[%s3] sm:$0xf] %vm70, %v66
  %72 = vst.msk [vmem:[%s3 + $0x4] sm:$0xf] %vm70, %v67
  // Predicated region
  $region14: #{_lambda_.11} parent=0 // pred_check
    _
  $region15: #{_lambda_.11} parent=0 // pred_check_branch
    %74 = sbr.rel (0) target = $region17
  $region16: #{_lambda_.11} parent=0 // pred_region
    _
  $region17: #{_lambda_.11} parent=0 // pred_fallthru
    _
  // Predicated region
  $region18: #{_lambda_.11} parent=0 // pred_check
    _
  $region19: #{_lambda_.11} parent=0 // pred_check_branch
    %76 = sbr.rel (0) target = $region21
  $region20: #{_lambda_.11} parent=0 // pred_region
    _
  $region21: #{_lambda_.11} parent=0 // pred_fallthru
    _

// kernel: _lambda_.14
$region0: #{_lambda_.14}
  #allocation0 [shape = 'u32[]', space=smem, size = 0x4, offset = 0x4, fixed_abs, tag = 'smem constant byte address 0x4 - core index']
  #allocation1 [shape = 'u32[144,128]{1,0:T(1,128)}', space=vmem, size = 0x12000, scoped, tag = 'internal scratch']
  %s0 = inlined_call_operand.vmem [shape: bf16[16,32], index: 0, kind: input, shape index: {}]
  %s1 = inlined_call_operand.vmem [shape: bf16[32,32], index: 1, kind: input, shape index: {}]
  %s2 = inlined_call_operand.vmem [shape: f32[1,32], index: 2, kind: input, shape index: {}]
  %s3 = inlined_call_operand.vmem [shape: bf16[16,32], index: 3, kind: input, shape index: {}]
  %s4 = inlined_call_operand.vmem [shape: f32[1,32], index: 4, kind: input, shape index: {}]
  %s5 = inlined_call_operand.vmem [shape: f32[1,32], index: 5, kind: input, shape index: {}]
  %s6 = inlined_call_operand.vmem [shape: bf16[16,32], index: 6, kind: output, shape index: {}]
  %s7 = sld [smem:[#allocation0]]
  $region34: #{_lambda_.14} parent=0
    _
  %s9 = ssub.s32 1, %s7
  %s10 = scalar_select 0, %s9, %s7
  // Predicated region
  $region2: #{_lambda_.14} parent=0 // pred_check
    _
  $region3: #{_lambda_.14} parent=0 // pred_check_branch
    %12 = sbr.rel (0) target = $region5
  $region4: #{_lambda_.14} parent=0 // pred_region
    _
  $region5: #{_lambda_.14} parent=0 // pred_fallthru
    _
  // Predicated region
  $region6: #{_lambda_.14} parent=0 // pred_check
    _
  $region7: #{_lambda_.14} parent=0 // pred_check_branch
    %14 = sbr.rel (0) target = $region9
  $region8: #{_lambda_.14} parent=0 // pred_region
    _
  $region9: #{_lambda_.14} parent=0 // pred_fallthru
    _
  // Predicated region
  $region10: #{_lambda_.14} parent=0 // pred_check
    _
  $region11: #{_lambda_.14} parent=0 // pred_check_branch
    %16 = sbr.rel (0) target = $region13
  $region12: #{_lambda_.14} parent=0 // pred_region
    _
  $region13: #{_lambda_.14} parent=0 // pred_fallthru
    _
  // Predicated region
  $region14: #{_lambda_.14} parent=0 // pred_check
    _
  $region15: #{_lambda_.14} parent=0 // pred_check_branch
    %18 = sbr.rel (0) target = $region17
  $region16: #{_lambda_.14} parent=0 // pred_region
    _
  $region17: #{_lambda_.14} parent=0 // pred_fallthru
    _
  // Predicated region
  $region18: #{_lambda_.14} parent=0 // pred_check
    _
  $region19: #{_lambda_.14} parent=0 // pred_check_branch
    %20 = sbr.rel (0) target = $region21
  $region20: #{_lambda_.14} parent=0 // pred_region
    _
  $region21: #{_lambda_.14} parent=0 // pred_fallthru
    _
  // Predicated region
  $region22: #{_lambda_.14} parent=0 // pred_check
    _
  $region23: #{_lambda_.14} parent=0 // pred_check_branch
    %22 = sbr.rel (0) target = $region25
  $region24: #{_lambda_.14} parent=0 // pred_region
    _
  $region25: #{_lambda_.14} parent=0 // pred_fallthru
    _
  %v24 = vld [vmem:[%s0] sm:$0xf]
  %v25 = vld [vmem:[%s0 + $0x4] sm:$0xf]
  %v26 = vld [vmem:[%s1] sm:$0xf]
  %v27 = vld [vmem:[%s1 + $0x4] sm:$0xf]
  %v28 = vld [vmem:[%s1 + $0x8] sm:$0xf]
  %v29 = vld [vmem:[%s1 + $0xc] sm:$0xf]
  %v30 = vld [vmem:[%s2] sm:$0x1]
  %v32 = vlaneseq
  %v33 = vshrl.u32 %v32, 7
  %v34 = vsub.s32 0, %v33
  %v35 = vrot.slane %v30, %v34
  %v39 = vunpack.c.l.b16 %v24
  %v40 = vunpack.c.l.b16 %v25
  %v41 = vpack.c.b16 %v40, %v39
  %v46 = vunpack.c.l.b16 %v26
  %v47 = vunpack.c.l.b16 %v27
  %v48 = vunpack.c.l.b16 %v28
  %v49 = vunpack.c.l.b16 %v29
  %v50 = vpack.c.b16 %v47, %v46
  %v51 = vpack.c.b16 %v49, %v48
  %vm54 = vcmask 261120
  %v56 = vsel %vm54, %v41, 0
  %58 = vmatprep.subr.bf16.mxu0 0
  %59 = vmatpush1.bf16.msra.mxu0 0
  %60 = vmatprep.subr.bf16.mxu0 0
  %61 = vmatpush1.bf16.msra.mxu0 0
  %62 = vmatprep.subr.bf16.mxu0 0
  %63 = vmatpush1.bf16.msra.mxu0 0
  %64 = vmatprep.subr.bf16.mxu0 0
  %65 = vmatpush1.bf16.msra.mxu0 0
  %66 = vmatprep.subr.bf16.mxu0 0
  %67 = vmatpush1.bf16.msra.mxu0 0
  %68 = vmatprep.subr.bf16.mxu0 0
  %69 = vmatpush1.bf16.msra.mxu0 0
  %70 = vmatprep.subr.bf16.mxu0 0
  %71 = vmatpush1.bf16.msra.mxu0 %v51
  %72 = vmatprep.subr.bf16.mxu0 0
  %73 = vmatpush1.bf16.msra.mxu0 %v50
  %74 = vmatprep.subr.bf16.mxu0 0
  %75 = vmatpush2.bf16.msra.mxu0 0
  %76 = vmatprep.subr.bf16.mxu0 0
  %77 = vmatpush2.bf16.msra.mxu0 0
  %78 = vmatprep.subr.bf16.mxu0 0
  %79 = vmatpush2.bf16.msra.mxu0 0
  %80 = vmatprep.subr.bf16.mxu0 0
  %81 = vmatpush2.bf16.msra.mxu0 0
  %82 = vmatprep.subr.bf16.mxu0 0
  %83 = vmatpush2.bf16.msra.mxu0 0
  %84 = vmatprep.subr.bf16.mxu0 0
  %85 = vmatpush2.bf16.msra.mxu0 0
  %86 = vmatprep.subr.bf16.mxu0 0
  %87 = vmatpush2.bf16.msra.mxu0 0
  %88 = vmatprep.subr.bf16.mxu0 0
  %89 = vmatpush2.bf16.msra.mxu0 0
  %90 = vmatprep.mubr.bf16.mxu0 0
  %91 = vmatmul.mubr.bf16.gmra.mxu0 %v56
  %v92 = vpop.f32.mrf.mxu0
  %v93 = vadd.f32 %v35, %v92
  %v94 = vpop.f32.mrf.mxu0
  %v95 = vpop.f32.mrf.mxu0
  %v96 = vadd.f32 %v35, %v95
  %v97 = vpop.f32.mrf.mxu0
  %98 = vdwg.mxu0
  %v99 = vld [vmem:[%s3] sm:$0xf]
  %v100 = vld [vmem:[%s3 + $0x4] sm:$0xf]
  %v101 = vunpack.c.l.bf16 %v99
  %v102 = vunpack.c.l.bf16 %v100
  %v103 = vadd.f32 %v93, %v101
  %v104 = vadd.f32 %v96, %v102
  %v105 = vsel %vm54, %v103, 0.0
  %106 = vadd.xlane.f32.xlu0 %v105
  %v107 = vpop.xlane.xlu0 %106
  %v108 = vsel %vm54, %v104, 0.0
  %109 = vadd.xlane.f32.xlu0 %v108
  %v110 = vpop.xlane.xlu0 %109
  %v111 = vrcp.pop 32.0
  %v112 = vmul.f32 %v107, %v111
  %v113 = vmul.f32 %v110, %v111
  %v114 = vsub.f32 %v103, %v112
  %v115 = vsub.f32 %v104, %v113
  %v116 = vmul.f32 %v114, %v114
  %v117 = vmul.f32 %v115, %v115
  %v118 = vsel %vm54, %v116, 0.0
  %119 = vadd.xlane.f32.xlu0 %v118
  %v120 = vpop.xlane.xlu0 %119
  %v121 = vsel %vm54, %v117, 0.0
  %122 = vadd.xlane.f32.xlu0 %v121
  %v123 = vpop.xlane.xlu0 %122
  %v124 = vmul.f32 %v120, %v111
  %v125 = vmul.f32 %v123, %v111
  %v126 = vadd.f32 %v124, 1e-12
  %v127 = vadd.f32 %v125, 1e-12
  %v128 = vrsqrt.pop %v126
  %v129 = vrsqrt.pop %v127
  %v130 = vmul.f32 %v114, %v128
  %v131 = vmul.f32 %v115, %v129
  %v132 = vld [vmem:[%s4] sm:$0x1]
  %v134 = vlaneseq
  %v135 = vshrl.u32 %v134, 7
  %v136 = vsub.s32 0, %v135
  %v137 = vrot.slane %v132, %v136
  %v139 = vmul.f32 %v130, %v137
  %v140 = vmul.f32 %v131, %v137
  %v141 = vld [vmem:[%s5] sm:$0x1]
  %v143 = vlaneseq
  %v144 = vshrl.u32 %v143, 7
  %v145 = vsub.s32 0, %v144
  %v146 = vrot.slane %v141, %v145
  %v148 = vadd.f32 %v139, %v146
  %v149 = vadd.f32 %v140, %v146
  %v150 = vpack.c.bf16 %v149, %v148
  %v152 = vunpack.c.l.b16 %v150
  %v153 = vunpack.c.h.b16 %v150
  %v154 = vpack.c.b16 %v152, %v152
  %v155 = vpack.c.b16 %v153, %v153
  %vm158 = vcmask 257024
  %159 = vst.msk [vmem:[%s6] sm:$0xf] %vm158, %v154
  %160 = vst.msk [vmem:[%s6 + $0x4] sm:$0xf] %vm158, %v155
  // Predicated region
  $region26: #{_lambda_.14} parent=0 // pred_check
    _
  $region27: #{_lambda_.14} parent=0 // pred_check_branch
    %162 = sbr.rel (0) target = $region29
  $region28: #{_lambda_.14} parent=0 // pred_region
    _
  $region29: #{_lambda_.14} parent=0 // pred_fallthru
    _
  // Predicated region
  $region30: #{_lambda_.14} parent=0 // pred_check
    _
  $region31: #{_lambda_.14} parent=0 // pred_check_branch
    %164 = sbr.rel (0) target = $region33
  $region32: #{_lambda_.14} parent=0 // pred_region
    _
  $region33: #{_lambda_.14} parent=0 // pred_fallthru
    _

// kernel: _lambda_.13
$region0: #{_lambda_.13}
  #allocation0 [shape = 'u32[]', space=smem, size = 0x4, offset = 0x4, fixed_abs, tag = 'smem constant byte address 0x4 - core index']
  #allocation1 [shape = 'u32[144,128]{1,0:T(1,128)}', space=vmem, size = 0x12000, scoped, tag = 'internal scratch']
  %s0 = inlined_call_operand.vmem [shape: bf16[16,32], index: 0, kind: input, shape index: {}]
  %s1 = inlined_call_operand.vmem [shape: bf16[16,32], index: 1, kind: input, shape index: {}]
  %s2 = inlined_call_operand.vmem [shape: bf16[16,32], index: 2, kind: input, shape index: {}]
  %s3 = inlined_call_operand.vmem [shape: f32[2,1,8], index: 3, kind: input, shape index: {}]
  %s4 = inlined_call_operand.vmem [shape: bf16[16,32], index: 4, kind: output, shape index: {}]
  %s5 = sld [smem:[#allocation0]]
  $region49: #{_lambda_.13} parent=0
    _
  %s7 = ssub.s32 1, %s5
  %s8 = scalar_select 0, %s7, %s5
  loop: start=0, step=1, limit=4
  $region2: #{_lambda_.13} parent=0 // loop_pre_header
    _
  $region3: #{_lambda_.13} parent=0 // loop_header
    %s10 = sphi 0, %s14
    %p11 = scmp.ge.s32.totalorder %s10, 4
    %s17 = sphi 0, %s36
    %s18 = sphi 0, %s32
    %s19 = sphi 0, %s28
    %s20 = sphi 0, %s17
    %s21 = sphi 0, %s18
    %s22 = sphi 0, %s19
    %s23 = sphi 0, %s20
    %s24 = sphi 0, %s21
    %s25 = sphi 0, %s22
    %s43 = sphi 0, %s45
    %s46 = sphi 0, %s43
    %s47 = sphi 0, %s46
    %s63 = sphi 0, %s47
    %s71 = sphi 0, %s73
    %s74 = sphi 0, %s71
    %s75 = sphi 0, %s74
    %s91 = sphi 0, %s75
    %s99 = sphi 0, %s101
    %s102 = sphi 0, %s99
    %s103 = sphi 0, %s102
    %s119 = sphi 0, %s103
    %s125 = sphi 0, %s127
    %s128 = sphi 0, %s125
    %s129 = sphi 0, %s128
    %s145 = sphi 0, %s129
    %s155 = sphi 0, %s157
    %s158 = sphi 0, %s155
    %s159 = sphi 0, %s158
    %s175 = sphi 0, %s159
  $region4: #{_lambda_.13} parent=0 // loop_header_branch
    %13 = sbr.rel (%p11) target = $region8
  $region5: #{_lambda_.13} parent=0 // loop_body
    %s15 = ssub.s32 %s10, 1
    %s16 = ssub.s32 %s10, 2
    %s26 = sadd.s32 1, %s19
    %p27 = scmp.ge.s32.totalorder %s26, 1
    %s28 = scalar_select %p27, 0, %s26
    %s29 = sadd.s32 1, %s18
    %s30 = scalar_select %p27, %s29, %s18
    %p31 = scmp.ge.s32.totalorder %s30, 1
    %s32 = scalar_select %p31, 0, %s30
    %s33 = sadd.s32 1, %s17
    %s34 = scalar_select %p31, %s33, %s17
    %p35 = scmp.ge.s32.totalorder %s34, 2
    %s36 = scalar_select %p35, 0, %s34
    %s37 = sadd.s32 %s17, %s19
    %s38 = sadd.s32 %s36, %s28
    %s39 = ssub.s32 %s37, %s38
    %s40 = ssub.s32 %s18, %s32
    %s41 = sor.u32 %s39, %s40
    %p42 = scmp.eq.s32.totalorder %s41, 0
    %s44 = sadd.s32 %s43, 1
    %s45 = scalar_select %p42, %s43, %s44
    %p48 = pneg %p42
    %p49 = scmp.eq.s32.totalorder %s10, 1
    %p50 = por %p48, %p49
    %p51 = scmp.ne.s32.totalorder %s43, %s46
    %p52 = scmp.eq.s32.totalorder %s10, 0
    %p53 = por %p51, %p52
    %p54 = scmp.ne.s32.totalorder %s43, %s46
    %p55 = scmp.eq.s32.totalorder %s15, 1
    %p56 = por %p54, %p55
    %p57 = scmp.ne.s32.totalorder %s46, %s47
    %p58 = scmp.eq.s32.totalorder %s15, 0
    %p59 = por %p57, %p58
    %p60 = scmp.ne.s32.totalorder %s46, %s47
    %p61 = scmp.eq.s32.totalorder %s16, 1
    %p62 = por %p60, %p61
    %p64 = scmp.ne.s32.totalorder %s47, %s63
    %p65 = scmp.eq.s32.totalorder %s16, 0
    %p66 = por %p64, %p65
    %s67 = ssub.s32 %s17, %s36
    %s68 = ssub.s32 %s18, %s32
    %s69 = sor.u32 %s67, %s68
    %p70 = scmp.eq.s32.totalorder %s69, 0
    %s72 = sadd.s32 %s71, 1
    %s73 = scalar_select %p70, %s71, %s72
    %p76 = pneg %p70
    %p77 = scmp.eq.s32.totalorder %s10, 1
    %p78 = por %p76, %p77
    %p79 = scmp.ne.s32.totalorder %s71, %s74
    %p80 = scmp.eq.s32.totalorder %s10, 0
    %p81 = por %p79, %p80
    %p82 = scmp.ne.s32.totalorder %s71, %s74
    %p83 = scmp.eq.s32.totalorder %s15, 1
    %p84 = por %p82, %p83
    %p85 = scmp.ne.s32.totalorder %s74, %s75
    %p86 = scmp.eq.s32.totalorder %s15, 0
    %p87 = por %p85, %p86
    %p88 = scmp.ne.s32.totalorder %s74, %s75
    %p89 = scmp.eq.s32.totalorder %s16, 1
    %p90 = por %p88, %p89
    %p92 = scmp.ne.s32.totalorder %s75, %s91
    %p93 = scmp.eq.s32.totalorder %s16, 0
    %p94 = por %p92, %p93
    %s95 = ssub.s32 %s17, %s36
    %s96 = ssub.s32 %s18, %s32
    %s97 = sor.u32 %s95, %s96
    %p98 = scmp.eq.s32.totalorder %s97, 0
    %s100 = sadd.s32 %s99, 1
    %s101 = scalar_select %p98, %s99, %s100
    %p104 = pneg %p98
    %p105 = scmp.eq.s32.totalorder %s10, 1
    %p106 = por %p104, %p105
    %p107 = scmp.ne.s32.totalorder %s99, %s102
    %p108 = scmp.eq.s32.totalorder %s10, 0
    %p109 = por %p107, %p108
    %p110 = scmp.ne.s32.totalorder %s99, %s102
    %p111 = scmp.eq.s32.totalorder %s15, 1
    %p112 = por %p110, %p111
    %p113 = scmp.ne.s32.totalorder %s102, %s103
    %p114 = scmp.eq.s32.totalorder %s15, 0
    %p115 = por %p113, %p114
    %p116 = scmp.ne.s32.totalorder %s102, %s103
    %p117 = scmp.eq.s32.totalorder %s16, 1
    %p118 = por %p116, %p117
    %p120 = scmp.ne.s32.totalorder %s103, %s119
    %p121 = scmp.eq.s32.totalorder %s16, 0
    %p122 = por %p120, %p121
    %s123 = ssub.s32 %s17, %s36
    %p124 = scmp.eq.s32.totalorder %s123, 0
    %s126 = sadd.s32 %s125, 1
    %s127 = scalar_select %p124, %s125, %s126
    %p130 = pneg %p124
    %p131 = scmp.eq.s32.totalorder %s10, 1
    %p132 = por %p130, %p131
    %p133 = scmp.ne.s32.totalorder %s125, %s128
    %p134 = scmp.eq.s32.totalorder %s10, 0
    %p135 = por %p133, %p134
    %p136 = scmp.ne.s32.totalorder %s125, %s128
    %p137 = scmp.eq.s32.totalorder %s15, 1
    %p138 = por %p136, %p137
    %p139 = scmp.ne.s32.totalorder %s128, %s129
    %p140 = scmp.eq.s32.totalorder %s15, 0
    %p141 = por %p139, %p140
    %p142 = scmp.ne.s32.totalorder %s128, %s129
    %p143 = scmp.eq.s32.totalorder %s16, 1
    %p144 = por %p142, %p143
    %p146 = scmp.ne.s32.totalorder %s129, %s145
    %p147 = scmp.eq.s32.totalorder %s16, 0
    %p148 = por %p146, %p147
    %s149 = sadd.s32 %s17, %s19
    %s150 = sadd.s32 %s36, %s28
    %s151 = ssub.s32 %s149, %s150
    %s152 = ssub.s32 %s18, %s32
    %s153 = sor.u32 %s151, %s152
    %p154 = scmp.eq.s32.totalorder %s153, 0
    %s156 = sadd.s32 %s155, 1
    %s157 = scalar_select %p154, %s155, %s156
    %p160 = pneg %p154
    %p161 = scmp.eq.s32.totalorder %s10, 1
    %p162 = por %p160, %p161
    %p163 = scmp.ne.s32.totalorder %s155, %s158
    %p164 = scmp.eq.s32.totalorder %s10, 0
    %p165 = por %p163, %p164
    %p166 = scmp.ne.s32.totalorder %s155, %s158
    %p167 = scmp.eq.s32.totalorder %s15, 1
    %p168 = por %p166, %p167
    %p169 = scmp.ne.s32.totalorder %s158, %s159
    %p170 = scmp.eq.s32.totalorder %s15, 0
    %p171 = por %p169, %p170
    %p172 = scmp.ne.s32.totalorder %s158, %s159
    %p173 = scmp.eq.s32.totalorder %s16, 1
    %p174 = por %p172, %p173
    %p176 = scmp.ne.s32.totalorder %s159, %s175
    %p177 = scmp.eq.s32.totalorder %s16, 0
    %p178 = por %p176, %p177
    %p179 = scmp.le.s32.totalorder 1, %s10
    %p180 = scmp.lt.s32.totalorder %s10, 3
    %p181 = pnand %p179, %p180
    %p182 = pneg %p181
    // Predicated region
    $region9: #{_lambda_.13} parent=5 // pred_check
      _
    $region10: #{_lambda_.13} parent=5 // pred_check_branch
      %184 = sbr.rel (%p181) target = $region12
    $region11: #{_lambda_.13} parent=5 // pred_region
      %s185 = ssub.s32 %s10, 1
    $region12: #{_lambda_.13} parent=5 // pred_fallthru
      _
    %p186 = scmp.lt.s32.totalorder %s10, 2
    // Predicated region
    $region13: #{_lambda_.13} parent=5 // pred_check
      %p187 = pneg %p186
    $region14: #{_lambda_.13} parent=5 // pred_check_branch
      %189 = sbr.rel (%p187) target = $region16
    $region15: #{_lambda_.13} parent=5 // pred_region
      // Predicated region
      $region17: #{_lambda_.13} parent=15 // pred_check
        %p190 = pneg %p53
      $region18: #{_lambda_.13} parent=15 // pred_check_branch
        %192 = sbr.rel (%p190) target = $region20
      $region19: #{_lambda_.13} parent=15 // pred_region
        %s193 = sadd.s32 %s17, %s19
        %p194 = scmp.lt.s32.totalorder %s193, 1
        %s195 = scalar_select %p194, %s193, 1
        %p196 = scmp.lt.s32.totalorder %s18, 0
        %s197 = scalar_select %p196, %s18, 0
        %s198 = sadd.s32 %s197, %s195
        %s199 = smul.addr %s198, 4
        %s200 = scalar_lea.vmem %s0, %s199
        %s201 = sadd.s32 %s17, %s19
      $region20: #{_lambda_.13} parent=15 // pred_fallthru
        _
      // Predicated region
      $region21: #{_lambda_.13} parent=15 // pred_check
        %p202 = pneg %p81
      $region22: #{_lambda_.13} parent=15 // pred_check_branch
        %204 = sbr.rel (%p202) target = $region24
      $region23: #{_lambda_.13} parent=15 // pred_region
        %p205 = scmp.lt.s32.totalorder %s17, 1
        %s206 = scalar_select %p205, %s17, 1
        %p207 = scmp.lt.s32.totalorder %s18, 0
        %s208 = scalar_select %p207, %s18, 0
        %s209 = sadd.s32 %s208, %s206
        %s210 = smul.addr %s209, 4
        %s211 = scalar_lea.vmem %s1, %s210
      $region24: #{_lambda_.13} parent=15 // pred_fallthru
        _
      // Predicated region
      $region25: #{_lambda_.13} parent=15 // pred_check
        %p212 = pneg %p109
      $region26: #{_lambda_.13} parent=15 // pred_check_branch
        %214 = sbr.rel (%p212) target = $region28
      $region27: #{_lambda_.13} parent=15 // pred_region
        %p215 = scmp.lt.s32.totalorder %s17, 1
        %s216 = scalar_select %p215, %s17, 1
        %p217 = scmp.lt.s32.totalorder %s18, 0
        %s218 = scalar_select %p217, %s18, 0
        %s219 = sadd.s32 %s218, %s216
        %s220 = smul.addr %s219, 4
        %s221 = scalar_lea.vmem %s2, %s220
      $region28: #{_lambda_.13} parent=15 // pred_fallthru
        _
      // Predicated region
      $region29: #{_lambda_.13} parent=15 // pred_check
        %p222 = pneg %p135
      $region30: #{_lambda_.13} parent=15 // pred_check_branch
        %224 = sbr.rel (%p222) target = $region32
      $region31: #{_lambda_.13} parent=15 // pred_region
        %p225 = scmp.lt.s32.totalorder %s17, 1
        %s226 = scalar_select %p225, %s17, 1
        %s227 = scalar_lea.vmem %s3, %s226
      $region32: #{_lambda_.13} parent=15 // pred_fallthru
        _
    $region16: #{_lambda_.13} parent=5 // pred_fallthru
      _
    %p228 = scmp.le.s32.totalorder 1, %s10
    %p229 = scmp.lt.s32.totalorder %s10, 3
    %p230 = pnand %p228, %p229
    %p231 = pneg %p230
    // Predicated region
    $region33: #{_lambda_.13} parent=5 // pred_check
      _
    $region34: #{_lambda_.13} parent=5 // pred_check_branch
      %233 = sbr.rel (%p230) target = $region36
    $region35: #{_lambda_.13} parent=5 // pred_region
      %s234 = ssub.s32 %s10, 1
      %s235 = sadd.s32 %s20, %s22
      %p236 = scmp.lt.s32.totalorder %s235, 1
      %s237 = scalar_select %p236, %s235, 1
      %p238 = scmp.lt.s32.totalorder %s21, 0
      %s239 = scalar_select %p238, %s21, 0
      %s240 = sadd.s32 %s239, %s237
      %s241 = smul.addr %s240, 4
      %s242 = scalar_lea.vmem %s0, %s241
      %p243 = pneg %p59
      %p244 = pneg %p56
      %p245 = scmp.lt.s32.totalorder %s20, 1
      %s246 = scalar_select %p245, %s20, 1
      %p247 = scmp.lt.s32.totalorder %s21, 0
      %s248 = scalar_select %p247, %s21, 0
      %s249 = sadd.s32 %s248, %s246
      %s250 = smul.addr %s249, 4
      %s251 = scalar_lea.vmem %s1, %s250
      %p252 = pneg %p87
      %p253 = pneg %p84
      %p254 = scmp.lt.s32.totalorder %s20, 1
      %s255 = scalar_select %p254, %s20, 1
      %p256 = scmp.lt.s32.totalorder %s21, 0
      %s257 = scalar_select %p256, %s21, 0
      %s258 = sadd.s32 %s257, %s255
      %s259 = smul.addr %s258, 4
      %s260 = scalar_lea.vmem %s2, %s259
      %p261 = pneg %p115
      %p262 = pneg %p112
      %p263 = scmp.lt.s32.totalorder %s20, 1
      %s264 = scalar_select %p263, %s20, 1
      %s265 = scalar_lea.vmem %s3, %s264
      %p266 = pneg %p141
      %p267 = pneg %p138
      %p268 = pneg %p171
      %p269 = pneg %p168
      %s270 = sadd.s32 %s20, %s22
      %p271 = scmp.lt.s32.totalorder %s270, 1
      %s272 = scalar_select %p271, %s270, 1
      %p273 = scmp.lt.s32.totalorder %s21, 0
      %s274 = scalar_select %p273, %s21, 0
      %s275 = sadd.s32 %s274, %s272
      %s276 = smul.addr %s275, 4
      %s277 = scalar_lea.vmem %s4, %s276
      %s278 = sadd.s32 %s20, %s22
      %p279 = scmp.lt.s32.totalorder %s278, 1
      %s280 = scalar_select %p279, %s278, 1
      %p281 = scmp.lt.s32.totalorder %s21, 0
      %s282 = scalar_select %p281, %s21, 0
      %s283 = sadd.s32 %s282, %s280
      %s284 = smul.addr %s283, 4
      %s285 = scalar_lea.vmem %s0, %s284
      %s286 = sadd.s32 %s20, %s22
      %p287 = scmp.lt.s32.totalorder %s20, 1
      %s288 = scalar_select %p287, %s20, 1
      %p289 = scmp.lt.s32.totalorder %s21, 0
      %s290 = scalar_select %p289, %s21, 0
      %s291 = sadd.s32 %s290, %s288
      %s292 = smul.addr %s291, 4
      %s293 = scalar_lea.vmem %s1, %s292
      %p294 = scmp.lt.s32.totalorder %s20, 1
      %s295 = scalar_select %p294, %s20, 1
      %p296 = scmp.lt.s32.totalorder %s21, 0
      %s297 = scalar_select %p296, %s21, 0
      %s298 = sadd.s32 %s297, %s295
      %s299 = smul.addr %s298, 4
      %s300 = scalar_lea.vmem %s2, %s299
      %p301 = scmp.lt.s32.totalorder %s20, 1
      %s302 = scalar_select %p301, %s20, 1
      %s303 = scalar_lea.vmem %s3, %s302
      %s304 = sadd.s32 %s20, %s22
      %p305 = scmp.lt.s32.totalorder %s304, 1
      %s306 = scalar_select %p305, %s304, 1
      %p307 = scmp.lt.s32.totalorder %s21, 0
      %s308 = scalar_select %p307, %s21, 0
      %s309 = sadd.s32 %s308, %s306
      %s310 = smul.addr %s309, 4
      %s311 = scalar_lea.vmem %s4, %s310
      %s312 = sadd.s32 %s20, %s22
      %v314 = vld [vmem:[%s303] sm:$0x1]
      %v315 = vld [vmem:[%s285] sm:$0xf]
      %v316 = vld [vmem:[%s293] sm:$0xf]
      %v317 = vld [vmem:[%s300] sm:$0xf]
      %v319 = vlaneseq
      %v320 = vshrl.u32 %v319, 7
      %v321 = vsub.s32 0, %v320
      %v322 = vrot.slane %v314, %v321
      %vm324 = vcmask 64512
      %v326 = vsel %vm324, %v315, 0
      %v329 = vsel %vm324, %v316, 0
      %331 = vmatprep.subr.bf16.mxu0 0
      %332 = vmatpush1.bf16.xpose.msra.mxu0 0
      %333 = vmatprep.subr.bf16.mxu0 0
      %334 = vmatpush1.bf16.xpose.msra.mxu0 0
      %335 = vmatprep.subr.bf16.mxu0 0
      %336 = vmatpush1.bf16.xpose.msra.mxu0 0
      %337 = vmatprep.subr.bf16.mxu0 0
      %338 = vmatpush1.bf16.xpose.msra.mxu0 0
      %339 = vmatprep.subr.bf16.mxu0 0
      %340 = vmatpush1.bf16.xpose.msra.mxu0 0
      %341 = vmatprep.subr.bf16.mxu0 0
      %342 = vmatpush1.bf16.xpose.msra.mxu0 0
      %343 = vmatprep.subr.bf16.mxu0 0
      %344 = vmatpush1.bf16.xpose.msra.mxu0 0
      %345 = vmatprep.subr.bf16.mxu0 0
      %346 = vmatpush1.bf16.xpose.msra.mxu0 %v329
      %347 = vmatprep.subr.bf16.mxu0 0
      %348 = vmatpush2.bf16.xpose.msra.mxu0 0
      %349 = vmatprep.subr.bf16.mxu0 0
      %350 = vmatpush2.bf16.xpose.msra.mxu0 0
      %351 = vmatprep.subr.bf16.mxu0 0
      %352 = vmatpush2.bf16.xpose.msra.mxu0 0
      %353 = vmatprep.subr.bf16.mxu0 0
      %354 = vmatpush2.bf16.xpose.msra.mxu0 0
      %355 = vmatprep.subr.bf16.mxu0 0
      %356 = vmatpush2.bf16.xpose.msra.mxu0 0
      %357 = vmatprep.subr.bf16.mxu0 0
      %358 = vmatpush2.bf16.xpose.msra.mxu0 0
      %359 = vmatprep.subr.bf16.mxu0 0
      %360 = vmatpush2.bf16.xpose.msra.mxu0 0
      %361 = vmatprep.subr.bf16.mxu0 0
      %362 = vmatpush2.bf16.xpose.msra.mxu0 0
      %363 = vmatprep.mubr.bf16.mxu0 0
      %364 = vmatmul.mubr.bf16.gmra.mxu0 %v326
      %v365 = vpop.f32.mrf.mxu0
      %v366 = vadd.f32 %v322, %v365
      %v367 = vpop.f32.mrf.mxu0
      %v368 = vpop.f32.mrf.mxu0
      %v369 = vpop.f32.mrf.mxu0
      %370 = vdwg.mxu0
      %v371 = vsel %vm324, %v366, -inf
      %372 = vmax.xlane.f32.xlu0 %v371
      %v373 = vpop.xlane.xlu0 %372
      %v374 = vsub.f32 %v366, %v373
      %v375 = vmul.f32 %v374, 1.442695
      %v376 = vpow.pop %v375
      %v377 = vsel %vm324, %v376, 0.0
      %378 = vadd.xlane.f32.xlu0 %v377
      %v379 = vpop.xlane.xlu0 %378
      %v380 = vpack.c.bf16 %v376, %v376
      %v382 = vsel %vm324, %v380, 0
      %vm384 = vcmask 1043456
      %v386 = vsel %vm384, %v317, 0
      %388 = vmatprep.subr.bf16.mxu0 0
      %389 = vmatpush1.bf16.msra.mxu0 0
      %390 = vmatprep.subr.bf16.mxu0 0
      %391 = vmatpush1.bf16.msra.mxu0 0
      %392 = vmatprep.subr.bf16.mxu0 0
      %393 = vmatpush1.bf16.msra.mxu0 0
      %394 = vmatprep.subr.bf16.mxu0 0
      %395 = vmatpush1.bf16.msra.mxu0 0
      %396 = vmatprep.subr.bf16.mxu0 0
      %397 = vmatpush1.bf16.msra.mxu0 0
      %398 = vmatprep.subr.bf16.mxu0 0
      %399 = vmatpush1.bf16.msra.mxu0 0
      %400 = vmatprep.subr.bf16.mxu0 0
      %401 = vmatpush1.bf16.msra.mxu0 0
      %402 = vmatprep.subr.bf16.mxu0 0
      %403 = vmatpush1.bf16.msra.mxu0 %v386
      %404 = vmatprep.subr.bf16.mxu0 0
      %405 = vmatpush2.bf16.msra.mxu0 0
      %406 = vmatprep.subr.bf16.mxu0 0
      %407 = vmatpush2.bf16.msra.mxu0 0
      %408 = vmatprep.subr.bf16.mxu0 0
      %409 = vmatpush2.bf16.msra.mxu0 0
      %410 = vmatprep.subr.bf16.mxu0 0
      %411 = vmatpush2.bf16.msra.mxu0 0
      %412 = vmatprep.subr.bf16.mxu0 0
      %413 = vmatpush2.bf16.msra.mxu0 0
      %414 = vmatprep.subr.bf16.mxu0 0
      %415 = vmatpush2.bf16.msra.mxu0 0
      %416 = vmatprep.subr.bf16.mxu0 0
      %417 = vmatpush2.bf16.msra.mxu0 0
      %418 = vmatprep.subr.bf16.mxu0 0
      %419 = vmatpush2.bf16.msra.mxu0 0
      %420 = vmatprep.mubr.bf16.mxu0 0
      %421 = vmatmul.mubr.bf16.gmra.mxu0 %v382
      %v422 = vpop.f32.mrf.mxu0
      %v423 = vadd.f32 0.0, %v422
      %v424 = vpop.f32.mrf.mxu0
      %v425 = vpop.f32.mrf.mxu0
      %v426 = vpop.f32.mrf.mxu0
      %427 = vdwg.mxu0
      %v428 = vrcp.pop %v379
      %v429 = vmul.f32 %v423, %v428
      %v430 = vpack.c.bf16 %v429, %v429
      %vm431 = vcmask 60416
      %432 = vst.msk [vmem:[%s311] sm:$0xf] %vm431, %v430
      %v433 = vld [vmem:[%s285] sm:$0xf]
      %v434 = vld [vmem:[%s293] sm:$0xf]
      %v435 = vld [vmem:[%s300] sm:$0xf]
      %v437 = vunpack.c.l.b16 %v433
      %v438 = vpack.c.b16 %v437, %v437
      %439 = vrot.lane.b32.xlu0 %v438, 120
      %v440 = vpop.permute.xlu0 %439
      %v442 = vunpack.c.l.b16 %v434
      %v443 = vpack.c.b16 %v442, %v442
      %444 = vrot.lane.b32.xlu0 %v443, 120
      %v445 = vpop.permute.xlu0 %444
      %v447 = vsel %vm324, %v440, 0
      %v450 = vsel %vm324, %v445, 0
      %452 = vmatprep.subr.bf16.mxu0 0
      %453 = vmatpush1.bf16.xpose.msra.mxu0 0
      %454 = vmatprep.subr.bf16.mxu0 0
      %455 = vmatpush1.bf16.xpose.msra.mxu0 0
      %456 = vmatprep.subr.bf16.mxu0 0
      %457 = vmatpush1.bf16.xpose.msra.mxu0 0
      %458 = vmatprep.subr.bf16.mxu0 0
      %459 = vmatpush1.bf16.xpose.msra.mxu0 0
      %460 = vmatprep.subr.bf16.mxu0 0
      %461 = vmatpush1.bf16.xpose.msra.mxu0 0
      %462 = vmatprep.subr.bf16.mxu0 0
      %463 = vmatpush1.bf16.xpose.msra.mxu0 0
      %464 = vmatprep.subr.bf16.mxu0 0
      %465 = vmatpush1.bf16.xpose.msra.mxu0 0
      %466 = vmatprep.subr.bf16.mxu0 0
      %467 = vmatpush1.bf16.xpose.msra.mxu0 %v450
      %468 = vmatprep.subr.bf16.mxu0 0
      %469 = vmatpush2.bf16.xpose.msra.mxu0 0
      %470 = vmatprep.subr.bf16.mxu0 0
      %471 = vmatpush2.bf16.xpose.msra.mxu0 0
      %472 = vmatprep.subr.bf16.mxu0 0
      %473 = vmatpush2.bf16.xpose.msra.mxu0 0
      %474 = vmatprep.subr.bf16.mxu0 0
      %475 = vmatpush2.bf16.xpose.msra.mxu0 0
      %476 = vmatprep.subr.bf16.mxu0 0
      %477 = vmatpush2.bf16.xpose.msra.mxu0 0
      %478 = vmatprep.subr.bf16.mxu0 0
      %479 = vmatpush2.bf16.xpose.msra.mxu0 0
      %480 = vmatprep.subr.bf16.mxu0 0
      %481 = vmatpush2.bf16.xpose.msra.mxu0 0
      %482 = vmatprep.subr.bf16.mxu0 0
      %483 = vmatpush2.bf16.xpose.msra.mxu0 0
      %484 = vmatprep.mubr.bf16.mxu0 0
      %485 = vmatmul.mubr.bf16.gmra.mxu0 %v447
      %v486 = vpop.f32.mrf.mxu0
      %v487 = vadd.f32 %v322, %v486
      %v488 = vpop.f32.mrf.mxu0
      %v489 = vpop.f32.mrf.mxu0
      %v490 = vpop.f32.mrf.mxu0
      %491 = vdwg.mxu0
      %v492 = vsel %vm324, %v487, -inf
      %493 = vmax.xlane.f32.xlu0 %v492
      %v494 = vpop.xlane.xlu0 %493
      %v495 = vsub.f32 %v487, %v494
      %v496 = vmul.f32 %v495, 1.442695
      %v497 = vpow.pop %v496
      %v498 = vsel %vm324, %v497, 0.0
      %499 = vadd.xlane.f32.xlu0 %v498
      %v500 = vpop.xlane.xlu0 %499
      %v501 = vpack.c.bf16 %v497, %v497
      %v503 = vunpack.c.l.b16 %v435
      %v504 = vpack.c.b16 %v503, %v503
      %505 = vrot.lane.b32.xlu0 %v504, 120
      %v506 = vpop.permute.xlu0 %505
      %v508 = vsel %vm324, %v501, 0
      %v511 = vsel %vm384, %v506, 0
      %513 = vmatprep.subr.bf16.mxu0 0
      %514 = vmatpush1.bf16.msra.mxu0 0
      %515 = vmatprep.subr.bf16.mxu0 0
      %516 = vmatpush1.bf16.msra.mxu0 0
      %517 = vmatprep.subr.bf16.mxu0 0
      %518 = vmatpush1.bf16.msra.mxu0 0
      %519 = vmatprep.subr.bf16.mxu0 0
      %520 = vmatpush1.bf16.msra.mxu0 0
      %521 = vmatprep.subr.bf16.mxu0 0
      %522 = vmatpush1.bf16.msra.mxu0 0
      %523 = vmatprep.subr.bf16.mxu0 0
      %524 = vmatpush1.bf16.msra.mxu0 0
      %525 = vmatprep.subr.bf16.mxu0 0
      %526 = vmatpush1.bf16.msra.mxu0 0
      %527 = vmatprep.subr.bf16.mxu0 0
      %528 = vmatpush1.bf16.msra.mxu0 %v511
      %529 = vmatprep.subr.bf16.mxu0 0
      %530 = vmatpush2.bf16.msra.mxu0 0
      %531 = vmatprep.subr.bf16.mxu0 0
      %532 = vmatpush2.bf16.msra.mxu0 0
      %533 = vmatprep.subr.bf16.mxu0 0
      %534 = vmatpush2.bf16.msra.mxu0 0
      %535 = vmatprep.subr.bf16.mxu0 0
      %536 = vmatpush2.bf16.msra.mxu0 0
      %537 = vmatprep.subr.bf16.mxu0 0
      %538 = vmatpush2.bf16.msra.mxu0 0
      %539 = vmatprep.subr.bf16.mxu0 0
      %540 = vmatpush2.bf16.msra.mxu0 0
      %541 = vmatprep.subr.bf16.mxu0 0
      %542 = vmatpush2.bf16.msra.mxu0 0
      %543 = vmatprep.subr.bf16.mxu0 0
      %544 = vmatpush2.bf16.msra.mxu0 0
      %545 = vmatprep.mubr.bf16.mxu0 0
      %546 = vmatmul.mubr.bf16.gmra.mxu0 %v508
      %v547 = vpop.f32.mrf.mxu0
      %v548 = vadd.f32 0.0, %v547
      %v549 = vpop.f32.mrf.mxu0
      %v550 = vpop.f32.mrf.mxu0
      %v551 = vpop.f32.mrf.mxu0
      %552 = vdwg.mxu0
      %v553 = vrcp.pop %v500
      %v554 = vmul.f32 %v548, %v553
      %v555 = vpack.c.bf16 %v554, %v554
      %v557 = vunpack.c.l.b16 %v555
      %v558 = vpack.c.b16 %v557, %v557
      %559 = vrot.lane.b32.xlu0 %v558, 8
      %v560 = vpop.permute.xlu0 %559
      %vm562 = vcmask 126016
      %563 = vst.msk [vmem:[%s311] sm:$0xf] %vm562, %v560
      %v564 = vld [vmem:[%s285] sm:$0xf]
      %v565 = vld [vmem:[%s293] sm:$0xf]
      %v566 = vld [vmem:[%s300] sm:$0xf]
      %v568 = vunpack.c.l.b16 %v564
      %v569 = vpack.c.b16 %v568, %v568
      %570 = vrot.lane.b32.xlu0 %v569, 112
      %v571 = vpop.permute.xlu0 %570
      %v573 = vunpack.c.l.b16 %v565
      %v574 = vpack.c.b16 %v573, %v573
      %575 = vrot.lane.b32.xlu0 %v574, 112
      %v576 = vpop.permute.xlu0 %575
      %v578 = vsel %vm324, %v571, 0
      %v581 = vsel %vm324, %v576, 0
      %583 = vmatprep.subr.bf16.mxu0 0
      %584 = vmatpush1.bf16.xpose.msra.mxu0 0
      %585 = vmatprep.subr.bf16.mxu0 0
      %586 = vmatpush1.bf16.xpose.msra.mxu0 0
      %587 = vmatprep.subr.bf16.mxu0 0
      %588 = vmatpush1.bf16.xpose.msra.mxu0 0
      %589 = vmatprep.subr.bf16.mxu0 0
      %590 = vmatpush1.bf16.xpose.msra.mxu0 0
      %591 = vmatprep.subr.bf16.mxu0 0
      %592 = vmatpush1.bf16.xpose.msra.mxu0 0
      %593 = vmatprep.subr.bf16.mxu0 0
      %594 = vmatpush1.bf16.xpose.msra.mxu0 0
      %595 = vmatprep.subr.bf16.mxu0 0
      %596 = vmatpush1.bf16.xpose.msra.mxu0 0
      %597 = vmatprep.subr.bf16.mxu0 0
      %598 = vmatpush1.bf16.xpose.msra.mxu0 %v581
      %599 = vmatprep.subr.bf16.mxu0 0
      %600 = vmatpush2.bf16.xpose.msra.mxu0 0
      %601 = vmatprep.subr.bf16.mxu0 0
      %602 = vmatpush2.bf16.xpose.msra.mxu0 0
      %603 = vmatprep.subr.bf16.mxu0 0
      %604 = vmatpush2.bf16.xpose.msra.mxu0 0
      %605 = vmatprep.subr.bf16.mxu0 0
      %606 = vmatpush2.bf16.xpose.msra.mxu0 0
      %607 = vmatprep.subr.bf16.mxu0 0
      %608 = vmatpush2.bf16.xpose.msra.mxu0 0
      %609 = vmatprep.subr.bf16.mxu0 0
      %610 = vmatpush2.bf16.xpose.msra.mxu0 0
      %611 = vmatprep.subr.bf16.mxu0 0
      %612 = vmatpush2.bf16.xpose.msra.mxu0 0
      %613 = vmatprep.subr.bf16.mxu0 0
      %614 = vmatpush2.bf16.xpose.msra.mxu0 0
      %615 = vmatprep.mubr.bf16.mxu0 0
      %616 = vmatmul.mubr.bf16.gmra.mxu0 %v578
      %v617 = vpop.f32.mrf.mxu0
      %v618 = vadd.f32 %v322, %v617
      %v619 = vpop.f32.mrf.mxu0
      %v620 = vpop.f32.mrf.mxu0
      %v621 = vpop.f32.mrf.mxu0
      %622 = vdwg.mxu0
      %v623 = vsel %vm324, %v618, -inf
      %624 = vmax.xlane.f32.xlu0 %v623
      %v625 = vpop.xlane.xlu0 %624
      %v626 = vsub.f32 %v618, %v625
      %v627 = vmul.f32 %v626, 1.442695
      %v628 = vpow.pop %v627
      %v629 = vsel %vm324, %v628, 0.0
      %630 = vadd.xlane.f32.xlu0 %v629
      %v631 = vpop.xlane.xlu0 %630
      %v632 = vpack.c.bf16 %v628, %v628
      %v634 = vunpack.c.l.b16 %v566
      %v635 = vpack.c.b16 %v634, %v634
      %636 = vrot.lane.b32.xlu0 %v635, 112
      %v637 = vpop.permute.xlu0 %636
      %v639 = vsel %vm324, %v632, 0
      %v642 = vsel %vm384, %v637, 0
      %644 = vmatprep.subr.bf16.mxu0 0
      %645 = vmatpush1.bf16.msra.mxu0 0
      %646 = vmatprep.subr.bf16.mxu0 0
      %647 = vmatpush1.bf16.msra.mxu0 0
      %648 = vmatprep.subr.bf16.mxu0 0
      %649 = vmatpush1.bf16.msra.mxu0 0
      %650 = vmatprep.subr.bf16.mxu0 0
      %651 = vmatpush1.bf16.msra.mxu0 0
      %652 = vmatprep.subr.bf16.mxu0 0
      %653 = vmatpush1.bf16.msra.mxu0 0
      %654 = vmatprep.subr.bf16.mxu0 0
      %655 = vmatpush1.bf16.msra.mxu0 0
      %656 = vmatprep.subr.bf16.mxu0 0
      %657 = vmatpush1.bf16.msra.mxu0 0
      %658 = vmatprep.subr.bf16.mxu0 0
      %659 = vmatpush1.bf16.msra.mxu0 %v642
      %660 = vmatprep.subr.bf16.mxu0 0
      %661 = vmatpush2.bf16.msra.mxu0 0
      %662 = vmatprep.subr.bf16.mxu0 0
      %663 = vmatpush2.bf16.msra.mxu0 0
      %664 = vmatprep.subr.bf16.mxu0 0
      %665 = vmatpush2.bf16.msra.mxu0 0
      %666 = vmatprep.subr.bf16.mxu0 0
      %667 = vmatpush2.bf16.msra.mxu0 0
      %668 = vmatprep.subr.bf16.mxu0 0
      %669 = vmatpush2.bf16.msra.mxu0 0
      %670 = vmatprep.subr.bf16.mxu0 0
      %671 = vmatpush2.bf16.msra.mxu0 0
      %672 = vmatprep.subr.bf16.mxu0 0
      %673 = vmatpush2.bf16.msra.mxu0 0
      %674 = vmatprep.subr.bf16.mxu0 0
      %675 = vmatpush2.bf16.msra.mxu0 0
      %676 = vmatprep.mubr.bf16.mxu0 0
      %677 = vmatmul.mubr.bf16.gmra.mxu0 %v639
      %v678 = vpop.f32.mrf.mxu0
      %v679 = vadd.f32 0.0, %v678
      %v680 = vpop.f32.mrf.mxu0
      %v681 = vpop.f32.mrf.mxu0
      %v682 = vpop.f32.mrf.mxu0
      %683 = vdwg.mxu0
      %v684 = vrcp.pop %v631
      %v685 = vmul.f32 %v679, %v684
      %v686 = vpack.c.bf16 %v685, %v685
      %v688 = vunpack.c.l.b16 %v686
      %v689 = vpack.c.b16 %v688, %v688
      %690 = vrot.lane.b32.xlu0 %v689, 16
      %v691 = vpop.permute.xlu0 %690
      %vm693 = vcmask 191616
      %694 = vst.msk [vmem:[%s311] sm:$0xf] %vm693, %v691
      %v695 = vld [vmem:[%s285] sm:$0xf]
      %v696 = vld [vmem:[%s293] sm:$0xf]
      %v697 = vld [vmem:[%s300] sm:$0xf]
      %v699 = vunpack.c.l.b16 %v695
      %v700 = vpack.c.b16 %v699, %v699
      %701 = vrot.lane.b32.xlu0 %v700, 104
      %v702 = vpop.permute.xlu0 %701
      %v704 = vunpack.c.l.b16 %v696
      %v705 = vpack.c.b16 %v704, %v704
      %706 = vrot.lane.b32.xlu0 %v705, 104
      %v707 = vpop.permute.xlu0 %706
      %v709 = vsel %vm324, %v702, 0
      %v712 = vsel %vm324, %v707, 0
      %714 = vmatprep.subr.bf16.mxu0 0
      %715 = vmatpush1.bf16.xpose.msra.mxu0 0
      %716 = vmatprep.subr.bf16.mxu0 0
      %717 = vmatpush1.bf16.xpose.msra.mxu0 0
      %718 = vmatprep.subr.bf16.mxu0 0
      %719 = vmatpush1.bf16.xpose.msra.mxu0 0
      %720 = vmatprep.subr.bf16.mxu0 0
      %721 = vmatpush1.bf16.xpose.msra.mxu0 0
      %722 = vmatprep.subr.bf16.mxu0 0
      %723 = vmatpush1.bf16.xpose.msra.mxu0 0
      %724 = vmatprep.subr.bf16.mxu0 0
      %725 = vmatpush1.bf16.xpose.msra.mxu0 0
      %726 = vmatprep.subr.bf16.mxu0 0
      %727 = vmatpush1.bf16.xpose.msra.mxu0 0
      %728 = vmatprep.subr.bf16.mxu0 0
      %729 = vmatpush1.bf16.xpose.msra.mxu0 %v712
      %730 = vmatprep.subr.bf16.mxu0 0
      %731 = vmatpush2.bf16.xpose.msra.mxu0 0
      %732 = vmatprep.subr.bf16.mxu0 0
      %733 = vmatpush2.bf16.xpose.msra.mxu0 0
      %734 = vmatprep.subr.bf16.mxu0 0
      %735 = vmatpush2.bf16.xpose.msra.mxu0 0
      %736 = vmatprep.subr.bf16.mxu0 0
      %737 = vmatpush2.bf16.xpose.msra.mxu0 0
      %738 = vmatprep.subr.bf16.mxu0 0
      %739 = vmatpush2.bf16.xpose.msra.mxu0 0
      %740 = vmatprep.subr.bf16.mxu0 0
      %741 = vmatpush2.bf16.xpose.msra.mxu0 0
      %742 = vmatprep.subr.bf16.mxu0 0
      %743 = vmatpush2.bf16.xpose.msra.mxu0 0
      %744 = vmatprep.subr.bf16.mxu0 0
      %745 = vmatpush2.bf16.xpose.msra.mxu0 0
      %746 = vmatprep.mubr.bf16.mxu0 0
      %747 = vmatmul.mubr.bf16.gmra.mxu0 %v709
      %v748 = vpop.f32.mrf.mxu0
      %v749 = vadd.f32 %v322, %v748
      %v750 = vpop.f32.mrf.mxu0
      %v751 = vpop.f32.mrf.mxu0
      %v752 = vpop.f32.mrf.mxu0
      %753 = vdwg.mxu0
      %v754 = vsel %vm324, %v749, -inf
      %755 = vmax.xlane.f32.xlu0 %v754
      %v756 = vpop.xlane.xlu0 %755
      %v757 = vsub.f32 %v749, %v756
      %v758 = vmul.f32 %v757, 1.442695
      %v759 = vpow.pop %v758
      %v760 = vsel %vm324, %v759, 0.0
      %761 = vadd.xlane.f32.xlu0 %v760
      %v762 = vpop.xlane.xlu0 %761
      %v763 = vpack.c.bf16 %v759, %v759
      %v765 = vunpack.c.l.b16 %v697
      %v766 = vpack.c.b16 %v765, %v765
      %767 = vrot.lane.b32.xlu0 %v766, 104
      %v768 = vpop.permute.xlu0 %767
      %v770 = vsel %vm324, %v763, 0
      %v773 = vsel %vm384, %v768, 0
      %775 = vmatprep.subr.bf16.mxu0 0
      %776 = vmatpush1.bf16.msra.mxu0 0
      %777 = vmatprep.subr.bf16.mxu0 0
      %778 = vmatpush1.bf16.msra.mxu0 0
      %779 = vmatprep.subr.bf16.mxu0 0
      %780 = vmatpush1.bf16.msra.mxu0 0
      %781 = vmatprep.subr.bf16.mxu0 0
      %782 = vmatpush1.bf16.msra.mxu0 0
      %783 = vmatprep.subr.bf16.mxu0 0
      %784 = vmatpush1.bf16.msra.mxu0 0
      %785 = vmatprep.subr.bf16.mxu0 0
      %786 = vmatpush1.bf16.msra.mxu0 0
      %787 = vmatprep.subr.bf16.mxu0 0
      %788 = vmatpush1.bf16.msra.mxu0 0
      %789 = vmatprep.subr.bf16.mxu0 0
      %790 = vmatpush1.bf16.msra.mxu0 %v773
      %791 = vmatprep.subr.bf16.mxu0 0
      %792 = vmatpush2.bf16.msra.mxu0 0
      %793 = vmatprep.subr.bf16.mxu0 0
      %794 = vmatpush2.bf16.msra.mxu0 0
      %795 = vmatprep.subr.bf16.mxu0 0
      %796 = vmatpush2.bf16.msra.mxu0 0
      %797 = vmatprep.subr.bf16.mxu0 0
      %798 = vmatpush2.bf16.msra.mxu0 0
      %799 = vmatprep.subr.bf16.mxu0 0
      %800 = vmatpush2.bf16.msra.mxu0 0
      %801 = vmatprep.subr.bf16.mxu0 0
      %802 = vmatpush2.bf16.msra.mxu0 0
      %803 = vmatprep.subr.bf16.mxu0 0
      %804 = vmatpush2.bf16.msra.mxu0 0
      %805 = vmatprep.subr.bf16.mxu0 0
      %806 = vmatpush2.bf16.msra.mxu0 0
      %807 = vmatprep.mubr.bf16.mxu0 0
      %808 = vmatmul.mubr.bf16.gmra.mxu0 %v770
      %v809 = vpop.f32.mrf.mxu0
      %v810 = vadd.f32 0.0, %v809
      %v811 = vpop.f32.mrf.mxu0
      %v812 = vpop.f32.mrf.mxu0
      %v813 = vpop.f32.mrf.mxu0
      %814 = vdwg.mxu0
      %v815 = vrcp.pop %v762
      %v816 = vmul.f32 %v810, %v815
      %v817 = vpack.c.bf16 %v816, %v816
      %v819 = vunpack.c.l.b16 %v817
      %v820 = vpack.c.b16 %v819, %v819
      %821 = vrot.lane.b32.xlu0 %v820, 24
      %v822 = vpop.permute.xlu0 %821
      %vm824 = vcmask 257216
      %825 = vst.msk [vmem:[%s311] sm:$0xf] %vm824, %v822
      %s826 = sadd.s32 %s20, %s22
      %p827 = scmp.lt.s32.totalorder %s826, 1
      %s828 = scalar_select %p827, %s826, 1
      %p829 = scmp.lt.s32.totalorder %s21, 0
      %s830 = scalar_select %p829, %s21, 0
      %s831 = sadd.s32 %s830, %s828
      %s832 = smul.addr %s831, 4
      %s833 = scalar_lea.vmem %s4, %s832
      // Predicated region
      $region37: #{_lambda_.13} parent=35 // pred_check
        %p834 = pneg %p168
      $region38: #{_lambda_.13} parent=35 // pred_check_branch
        %836 = sbr.rel (%p834) target = $region40
      $region39: #{_lambda_.13} parent=35 // pred_region
        %s837 = sadd.s32 %s20, %s22
      $region40: #{_lambda_.13} parent=35 // pred_fallthru
        _
    $region36: #{_lambda_.13} parent=5 // pred_fallthru
      _
    %p838 = scmp.le.s32.totalorder 2, %s10
    // Predicated region
    $region41: #{_lambda_.13} parent=5 // pred_check
      %p839 = pneg %p838
    $region42: #{_lambda_.13} parent=5 // pred_check_branch
      %841 = sbr.rel (%p839) target = $region44
    $region43: #{_lambda_.13} parent=5 // pred_region
      %s842 = ssub.s32 %s10, 2
      // Predicated region
      $region45: #{_lambda_.13} parent=43 // pred_check
        %p843 = pneg %p174
      $region46: #{_lambda_.13} parent=43 // pred_check_branch
        %845 = sbr.rel (%p843) target = $region48
      $region47: #{_lambda_.13} parent=43 // pred_region
        %s846 = sadd.s32 %s23, %s25
        %p847 = scmp.lt.s32.totalorder %s846, 1
        %s848 = scalar_select %p847, %s846, 1
        %p849 = scmp.lt.s32.totalorder %s24, 0
        %s850 = scalar_select %p849, %s24, 0
        %s851 = sadd.s32 %s850, %s848
        %s852 = smul.addr %s851, 4
        %s853 = scalar_lea.vmem %s4, %s852
      $region48: #{_lambda_.13} parent=43 // pred_fallthru
        _
    $region44: #{_lambda_.13} parent=5 // pred_fallthru
      _
  $region6: #{_lambda_.13} parent=0 // loop_footer
    %s14 = sadd.s32 1, %s10
  $region7: #{_lambda_.13} parent=0 // loop_footer_branch
    %9 = sbr.rel target = $region3
  $region8: #{_lambda_.13} parent=0 // loop_exit
    _

// kernel: _lambda_.15
$region0: #{_lambda_.15}
  #allocation0 [shape = 'u32[]', space=smem, size = 0x4, offset = 0x4, fixed_abs, tag = 'smem constant byte address 0x4 - core index']
  #allocation1 [shape = 'u32[144,128]{1,0:T(1,128)}', space=vmem, size = 0x12000, scoped, tag = 'internal scratch']
  %s0 = inlined_call_operand.vmem [shape: bf16[16,32], index: 0, kind: input, shape index: {}]
  %s1 = inlined_call_operand.vmem [shape: bf16[32,64], index: 1, kind: input, shape index: {}]
  %s2 = inlined_call_operand.vmem [shape: f32[1,64], index: 2, kind: input, shape index: {}]
  %s3 = inlined_call_operand.vmem [shape: bf16[16,64], index: 3, kind: output, shape index: {}]
  %s4 = sld [smem:[#allocation0]]
  $region22: #{_lambda_.15} parent=0
    _
  %s6 = ssub.s32 1, %s4
  %s7 = scalar_select 0, %s6, %s4
  // Predicated region
  $region2: #{_lambda_.15} parent=0 // pred_check
    _
  $region3: #{_lambda_.15} parent=0 // pred_check_branch
    %9 = sbr.rel (0) target = $region5
  $region4: #{_lambda_.15} parent=0 // pred_region
    _
  $region5: #{_lambda_.15} parent=0 // pred_fallthru
    _
  // Predicated region
  $region6: #{_lambda_.15} parent=0 // pred_check
    _
  $region7: #{_lambda_.15} parent=0 // pred_check_branch
    %11 = sbr.rel (0) target = $region9
  $region8: #{_lambda_.15} parent=0 // pred_region
    _
  $region9: #{_lambda_.15} parent=0 // pred_fallthru
    _
  // Predicated region
  $region10: #{_lambda_.15} parent=0 // pred_check
    _
  $region11: #{_lambda_.15} parent=0 // pred_check_branch
    %13 = sbr.rel (0) target = $region13
  $region12: #{_lambda_.15} parent=0 // pred_region
    _
  $region13: #{_lambda_.15} parent=0 // pred_fallthru
    _
  %v15 = vld [vmem:[%s0] sm:$0xf]
  %v16 = vld [vmem:[%s0 + $0x4] sm:$0xf]
  %v17 = vld [vmem:[%s1] sm:$0xf]
  %v18 = vld [vmem:[%s1 + $0x4] sm:$0xf]
  %v19 = vld [vmem:[%s1 + $0x8] sm:$0xf]
  %v20 = vld [vmem:[%s1 + $0xc] sm:$0xf]
  %v21 = vld [vmem:[%s2] sm:$0x1]
  %v23 = vlaneseq
  %v24 = vshrl.u32 %v23, 7
  %v25 = vsub.s32 0, %v24
  %v26 = vrot.slane %v21, %v25
  %v30 = vunpack.c.l.b16 %v15
  %v31 = vunpack.c.l.b16 %v16
  %v32 = vpack.c.b16 %v31, %v30
  %v37 = vunpack.c.l.b16 %v17
  %v38 = vunpack.c.l.b16 %v18
  %v39 = vunpack.c.l.b16 %v19
  %v40 = vunpack.c.l.b16 %v20
  %v41 = vpack.c.b16 %v38, %v37
  %v42 = vpack.c.b16 %v40, %v39
  %vm45 = vcmask 261120
  %v47 = vsel %vm45, %v32, 0
  %49 = vmatprep.subr.bf16.mxu0 0
  %50 = vmatpush1.bf16.msra.mxu0 0
  %51 = vmatprep.subr.bf16.mxu0 0
  %52 = vmatpush1.bf16.msra.mxu0 0
  %53 = vmatprep.subr.bf16.mxu0 0
  %54 = vmatpush1.bf16.msra.mxu0 0
  %55 = vmatprep.subr.bf16.mxu0 0
  %56 = vmatpush1.bf16.msra.mxu0 0
  %57 = vmatprep.subr.bf16.mxu0 0
  %58 = vmatpush1.bf16.msra.mxu0 0
  %59 = vmatprep.subr.bf16.mxu0 0
  %60 = vmatpush1.bf16.msra.mxu0 0
  %61 = vmatprep.subr.bf16.mxu0 0
  %62 = vmatpush1.bf16.msra.mxu0 %v42
  %63 = vmatprep.subr.bf16.mxu0 0
  %64 = vmatpush1.bf16.msra.mxu0 %v41
  %65 = vmatprep.subr.bf16.mxu0 0
  %66 = vmatpush2.bf16.msra.mxu0 0
  %67 = vmatprep.subr.bf16.mxu0 0
  %68 = vmatpush2.bf16.msra.mxu0 0
  %69 = vmatprep.subr.bf16.mxu0 0
  %70 = vmatpush2.bf16.msra.mxu0 0
  %71 = vmatprep.subr.bf16.mxu0 0
  %72 = vmatpush2.bf16.msra.mxu0 0
  %73 = vmatprep.subr.bf16.mxu0 0
  %74 = vmatpush2.bf16.msra.mxu0 0
  %75 = vmatprep.subr.bf16.mxu0 0
  %76 = vmatpush2.bf16.msra.mxu0 0
  %77 = vmatprep.subr.bf16.mxu0 0
  %78 = vmatpush2.bf16.msra.mxu0 0
  %79 = vmatprep.subr.bf16.mxu0 0
  %80 = vmatpush2.bf16.msra.mxu0 0
  %81 = vmatprep.mubr.bf16.mxu0 0
  %82 = vmatmul.mubr.bf16.gmra.mxu0 %v47
  %v83 = vpop.f32.mrf.mxu0
  %v84 = vadd.f32 %v26, %v83
  %v85 = vpop.f32.mrf.mxu0
  %v86 = vpop.f32.mrf.mxu0
  %v87 = vadd.f32 %v26, %v86
  %v88 = vpop.f32.mrf.mxu0
  %89 = vdwg.mxu0
  %v90 = vmul.f32 %v84, 0.5
  %v91 = vmul.f32 %v87, 0.5
  %v92 = vmul.f32 %v84, 0.70710677
  %v93 = vmul.f32 %v87, 0.70710677
  %v94 = verf.f32.pop %v92
  %v95 = verf.f32.pop %v93
  %v96 = vadd.f32 %v94, 1.0
  %v97 = vadd.f32 %v95, 1.0
  %v98 = vmul.f32 %v90, %v96
  %v99 = vmul.f32 %v91, %v97
  %v100 = vpack.c.bf16 %v99, %v98
  %v102 = vunpack.c.l.b16 %v100
  %v103 = vunpack.c.h.b16 %v100
  %v104 = vpack.c.b16 %v102, %v102
  %v105 = vpack.c.b16 %v103, %v103
  %vm108 = vcmask 519168
  %109 = vst.msk [vmem:[%s3] sm:$0xf] %vm108, %v104
  %110 = vst.msk [vmem:[%s3 + $0x4] sm:$0xf] %vm108, %v105
  // Predicated region
  $region14: #{_lambda_.15} parent=0 // pred_check
    _
  $region15: #{_lambda_.15} parent=0 // pred_check_branch
    %112 = sbr.rel (0) target = $region17
  $region16: #{_lambda_.15} parent=0 // pred_region
    _
  $region17: #{_lambda_.15} parent=0 // pred_fallthru
    _
  // Predicated region
  $region18: #{_lambda_.15} parent=0 // pred_check
    _
  $region19: #{_lambda_.15} parent=0 // pred_check_branch
    %114 = sbr.rel (0) target = $region21
  $region20: #{_lambda_.15} parent=0 // pred_region
    _
  $region21: #{_lambda_.15} parent=0 // pred_fallthru
    _

// kernel: _lambda_.16
$region0: #{_lambda_.16}
  #allocation0 [shape = 'u32[]', space=smem, size = 0x4, offset = 0x4, fixed_abs, tag = 'smem constant byte address 0x4 - core index']
  #allocation1 [shape = 'u32[144,128]{1,0:T(1,128)}', space=vmem, size = 0x12000, scoped, tag = 'internal scratch']
  %s0 = inlined_call_operand.vmem [shape: bf16[16,64], index: 0, kind: input, shape index: {}]
  %s1 = inlined_call_operand.vmem [shape: bf16[64,32], index: 1, kind: input, shape index: {}]
  %s2 = inlined_call_operand.vmem [shape: f32[1,32], index: 2, kind: input, shape index: {}]
  %s3 = inlined_call_operand.vmem [shape: bf16[16,32], index: 3, kind: input, shape index: {}]
  %s4 = inlined_call_operand.vmem [shape: f32[1,32], index: 4, kind: input, shape index: {}]
  %s5 = inlined_call_operand.vmem [shape: f32[1,32], index: 5, kind: input, shape index: {}]
  %s6 = inlined_call_operand.vmem [shape: bf16[16,32], index: 6, kind: output, shape index: {}]
  %s7 = sld [smem:[#allocation0]]
  $region34: #{_lambda_.16} parent=0
    _
  %s9 = ssub.s32 1, %s7
  %s10 = scalar_select 0, %s9, %s7
  // Predicated region
  $region2: #{_lambda_.16} parent=0 // pred_check
    _
  $region3: #{_lambda_.16} parent=0 // pred_check_branch
    %12 = sbr.rel (0) target = $region5
  $region4: #{_lambda_.16} parent=0 // pred_region
    _
  $region5: #{_lambda_.16} parent=0 // pred_fallthru
    _
  // Predicated region
  $region6: #{_lambda_.16} parent=0 // pred_check
    _
  $region7: #{_lambda_.16} parent=0 // pred_check_branch
    %14 = sbr.rel (0) target = $region9
  $region8: #{_lambda_.16} parent=0 // pred_region
    _
  $region9: #{_lambda_.16} parent=0 // pred_fallthru
    _
  // Predicated region
  $region10: #{_lambda_.16} parent=0 // pred_check
    _
  $region11: #{_lambda_.16} parent=0 // pred_check_branch
    %16 = sbr.rel (0) target = $region13
  $region12: #{_lambda_.16} parent=0 // pred_region
    _
  $region13: #{_lambda_.16} parent=0 // pred_fallthru
    _
  // Predicated region
  $region14: #{_lambda_.16} parent=0 // pred_check
    _
  $region15: #{_lambda_.16} parent=0 // pred_check_branch
    %18 = sbr.rel (0) target = $region17
  $region16: #{_lambda_.16} parent=0 // pred_region
    _
  $region17: #{_lambda_.16} parent=0 // pred_fallthru
    _
  // Predicated region
  $region18: #{_lambda_.16} parent=0 // pred_check
    _
  $region19: #{_lambda_.16} parent=0 // pred_check_branch
    %20 = sbr.rel (0) target = $region21
  $region20: #{_lambda_.16} parent=0 // pred_region
    _
  $region21: #{_lambda_.16} parent=0 // pred_fallthru
    _
  // Predicated region
  $region22: #{_lambda_.16} parent=0 // pred_check
    _
  $region23: #{_lambda_.16} parent=0 // pred_check_branch
    %22 = sbr.rel (0) target = $region25
  $region24: #{_lambda_.16} parent=0 // pred_region
    _
  $region25: #{_lambda_.16} parent=0 // pred_fallthru
    _
  %v24 = vld [vmem:[%s0] sm:$0xf]
  %v25 = vld [vmem:[%s0 + $0x4] sm:$0xf]
  %v26 = vld [vmem:[%s1] sm:$0xf]
  %v27 = vld [vmem:[%s1 + $0x4] sm:$0xf]
  %v28 = vld [vmem:[%s1 + $0x8] sm:$0xf]
  %v29 = vld [vmem:[%s1 + $0xc] sm:$0xf]
  %v30 = vld [vmem:[%s1 + $0x10] sm:$0xf]
  %v31 = vld [vmem:[%s1 + $0x14] sm:$0xf]
  %v32 = vld [vmem:[%s1 + $0x18] sm:$0xf]
  %v33 = vld [vmem:[%s1 + $0x1c] sm:$0xf]
  %v34 = vld [vmem:[%s2] sm:$0x1]
  %v36 = vlaneseq
  %v37 = vshrl.u32 %v36, 7
  %v38 = vsub.s32 0, %v37
  %v39 = vrot.slane %v34, %v38
  %v43 = vunpack.c.l.b16 %v24
  %v44 = vunpack.c.l.b16 %v25
  %v45 = vpack.c.b16 %v44, %v43
  %v54 = vunpack.c.l.b16 %v26
  %v55 = vunpack.c.l.b16 %v27
  %v56 = vunpack.c.l.b16 %v28
  %v57 = vunpack.c.l.b16 %v29
  %v58 = vunpack.c.l.b16 %v30
  %v59 = vunpack.c.l.b16 %v31
  %v60 = vunpack.c.l.b16 %v32
  %v61 = vunpack.c.l.b16 %v33
  %v62 = vpack.c.b16 %v55, %v54
  %v63 = vpack.c.b16 %v57, %v56
  %v64 = vpack.c.b16 %v59, %v58
  %v65 = vpack.c.b16 %v61, %v60
  %vm70 = vcmask 523264
  %v72 = vsel %vm70, %v45, 0
  %74 = vmatprep.subr.bf16.mxu0 0
  %75 = vmatpush1.bf16.msra.mxu0 0
  %76 = vmatprep.subr.bf16.mxu0 0
  %77 = vmatpush1.bf16.msra.mxu0 0
  %78 = vmatprep.subr.bf16.mxu0 0
  %79 = vmatpush1.bf16.msra.mxu0 0
  %80 = vmatprep.subr.bf16.mxu0 0
  %81 = vmatpush1.bf16.msra.mxu0 0
  %82 = vmatprep.subr.bf16.mxu0 0
  %83 = vmatpush1.bf16.msra.mxu0 %v65
  %84 = vmatprep.subr.bf16.mxu0 0
  %85 = vmatpush1.bf16.msra.mxu0 %v64
  %86 = vmatprep.subr.bf16.mxu0 0
  %87 = vmatpush1.bf16.msra.mxu0 %v63
  %88 = vmatprep.subr.bf16.mxu0 0
  %89 = vmatpush1.bf16.msra.mxu0 %v62
  %90 = vmatprep.subr.bf16.mxu0 0
  %91 = vmatpush2.bf16.msra.mxu0 0
  %92 = vmatprep.subr.bf16.mxu0 0
  %93 = vmatpush2.bf16.msra.mxu0 0
  %94 = vmatprep.subr.bf16.mxu0 0
  %95 = vmatpush2.bf16.msra.mxu0 0
  %96 = vmatprep.subr.bf16.mxu0 0
  %97 = vmatpush2.bf16.msra.mxu0 0
  %98 = vmatprep.subr.bf16.mxu0 0
  %99 = vmatpush2.bf16.msra.mxu0 0
  %100 = vmatprep.subr.bf16.mxu0 0
  %101 = vmatpush2.bf16.msra.mxu0 0
  %102 = vmatprep.subr.bf16.mxu0 0
  %103 = vmatpush2.bf16.msra.mxu0 0
  %104 = vmatprep.subr.bf16.mxu0 0
  %105 = vmatpush2.bf16.msra.mxu0 0
  %106 = vmatprep.mubr.bf16.mxu0 0
  %107 = vmatmul.mubr.bf16.gmra.mxu0 %v72
  %v108 = vpop.f32.mrf.mxu0
  %v109 = vadd.f32 %v39, %v108
  %v110 = vpop.f32.mrf.mxu0
  %v111 = vpop.f32.mrf.mxu0
  %v112 = vadd.f32 %v39, %v111
  %v113 = vpop.f32.mrf.mxu0
  %114 = vdwg.mxu0
  %v115 = vld [vmem:[%s3] sm:$0xf]
  %v116 = vld [vmem:[%s3 + $0x4] sm:$0xf]
  %v117 = vunpack.c.l.bf16 %v115
  %v118 = vunpack.c.l.bf16 %v116
  %v119 = vadd.f32 %v109, %v117
  %v120 = vadd.f32 %v112, %v118
  %vm121 = vcmask 261120
  %v122 = vsel %vm121, %v119, 0.0
  %123 = vadd.xlane.f32.xlu0 %v122
  %v124 = vpop.xlane.xlu0 %123
  %v125 = vsel %vm121, %v120, 0.0
  %126 = vadd.xlane.f32.xlu0 %v125
  %v127 = vpop.xlane.xlu0 %126
  %v128 = vrcp.pop 32.0
  %v129 = vmul.f32 %v124, %v128
  %v130 = vmul.f32 %v127, %v128
  %v131 = vsub.f32 %v119, %v129
  %v132 = vsub.f32 %v120, %v130
  %v133 = vmul.f32 %v131, %v131
  %v134 = vmul.f32 %v132, %v132
  %v135 = vsel %vm121, %v133, 0.0
  %136 = vadd.xlane.f32.xlu0 %v135
  %v137 = vpop.xlane.xlu0 %136
  %v138 = vsel %vm121, %v134, 0.0
  %139 = vadd.xlane.f32.xlu0 %v138
  %v140 = vpop.xlane.xlu0 %139
  %v141 = vmul.f32 %v137, %v128
  %v142 = vmul.f32 %v140, %v128
  %v143 = vadd.f32 %v141, 1e-12
  %v144 = vadd.f32 %v142, 1e-12
  %v145 = vrsqrt.pop %v143
  %v146 = vrsqrt.pop %v144
  %v147 = vmul.f32 %v131, %v145
  %v148 = vmul.f32 %v132, %v146
  %v149 = vld [vmem:[%s4] sm:$0x1]
  %v151 = vlaneseq
  %v152 = vshrl.u32 %v151, 7
  %v153 = vsub.s32 0, %v152
  %v154 = vrot.slane %v149, %v153
  %v156 = vmul.f32 %v147, %v154
  %v157 = vmul.f32 %v148, %v154
  %v158 = vld [vmem:[%s5] sm:$0x1]
  %v160 = vlaneseq
  %v161 = vshrl.u32 %v160, 7
  %v162 = vsub.s32 0, %v161
  %v163 = vrot.slane %v158, %v162
  %v165 = vadd.f32 %v156, %v163
  %v166 = vadd.f32 %v157, %v163
  %v167 = vpack.c.bf16 %v166, %v165
  %v169 = vunpack.c.l.b16 %v167
  %v170 = vunpack.c.h.b16 %v167
  %v171 = vpack.c.b16 %v169, %v169
  %v172 = vpack.c.b16 %v170, %v170
  %vm175 = vcmask 257024
  %176 = vst.msk [vmem:[%s6] sm:$0xf] %vm175, %v171
  %177 = vst.msk [vmem:[%s6 + $0x4] sm:$0xf] %vm175, %v172
  // Predicated region
  $region26: #{_lambda_.16} parent=0 // pred_check
    _
  $region27: #{_lambda_.16} parent=0 // pred_check_branch
    %179 = sbr.rel (0) target = $region29
  $region28: #{_lambda_.16} parent=0 // pred_region
    _
  $region29: #{_lambda_.16} parent=0 // pred_fallthru
    _
  // Predicated region
  $region30: #{_lambda_.16} parent=0 // pred_check
    _
  $region31: #{_lambda_.16} parent=0 // pred_check_branch
    %181 = sbr.rel (0) target = $region33
  $region32: #{_lambda_.16} parent=0 // pred_region
    _
  $region33: #{_lambda_.16} parent=0 // pred_fallthru
    _

</llo_original>
